<compile_context>
chip_gen: v7x
topology: tpu7x:2x2x1
jax: 0.10.0
libtpu: 0.0.40
codegen_flags: <defaults>
</compile_context>

<pallas_src>
import jax
import jax.numpy as jnp
from jax import lax
from jax.experimental import pallas as pl
from jax.experimental.pallas import tpu as pltpu

_LANE = 128
_NEG_INF = -1e30  # finite "minus infinity" for padded logit lanes


def _round_up(n, m):
    return ((n + m - 1) // m) * m


def _lstm_kernel(x_ref, wih_t_ref, whh_t_ref, bias_ref, wlin_t_ref, blin_ref,
                 out_ref, xproj_scr, h_all_scr):
    """Full-sequence LSTM + Linear + log_softmax, single program.

    x_ref      : (T, in)       f32
    wih_t_ref  : (in, 4*Hp)    bf16  gate-block-aligned W_ih^T
    whh_t_ref  : (Hp, 4*Hp)    bf16  gate-block-aligned W_hh^T (pad rows = 0)
    bias_ref   : (1, 4*Hp)     f32   b_ih + b_hh, gate-block-aligned (pad = 0)
    wlin_t_ref : (Hp, OUTp)    bf16  W_lin^T, zero padded
    blin_ref   : (1, OUTp)     f32   b_lin, padded lanes = -1e30
    out_ref    : (T, OUTp)     f32   log_softmax (valid in first `out` lanes)
    xproj_scr  : (T, 4*Hp)     f32   VMEM scratch (precomputed input projection)
    h_all_scr  : (T, Hp)       f32   VMEM scratch (all hidden states)
    """
    T = x_ref.shape[0]
    Hp = h_all_scr.shape[1]

    # ---- (1) Input projection for ALL timesteps at once (off the serial path).
    x = x_ref[...]
    xproj_scr[...] = (
        jnp.dot(x.astype(jnp.bfloat16), wih_t_ref[...],
                preferred_element_type=jnp.float32)
        + bias_ref[...])

    # Hoist the recurrent weight load out of the loop.
    whh_t = whh_t_ref[...]

    # ---- (2) Recurrence over time; only h @ W_hh^T is on the critical path.
    def step(t, carry):
        h_prev, c_prev = carry                              # (1, Hp) f32 each
        xp_t = xproj_scr[pl.ds(t, 1), :]                    # (1, 4Hp) f32
        gates = xp_t + jnp.dot(h_prev.astype(jnp.bfloat16), whh_t,
                               preferred_element_type=jnp.float32)
        # Gate blocks are 128-lane aligned; PyTorch nn.LSTM order: i, f, g, o.
        i_g = jax.nn.sigmoid(gates[:, 0 * Hp:1 * Hp])
        f_g = jax.nn.sigmoid(gates[:, 1 * Hp:2 * Hp])
        g_g = jnp.tanh(gates[:, 2 * Hp:3 * Hp])
        o_g = jax.nn.sigmoid(gates[:, 3 * Hp:4 * Hp])
        c_t = f_g * c_prev + i_g * g_g
        h_t = o_g * jnp.tanh(c_t)
        h_all_scr[pl.ds(t, 1), :] = h_t                     # not on recurrence path
        return (h_t, c_t)

    zeros = jnp.zeros((1, Hp), jnp.float32)                 # zero initial h/c
    lax.fori_loop(0, T, step, (zeros, zeros), unroll=True)

    # ---- (3) Output head, batched over all timesteps: one matmul, one
    #          log_softmax, one lane-dense store.
    h_all = h_all_scr[...]                                  # (T, Hp) f32
    pred = (jnp.dot(h_all.astype(jnp.bfloat16), wlin_t_ref[...],
                    preferred_element_type=jnp.float32)
            + blin_ref[...])                                # (T, OUTp); pads ~ -1e30
    m = jnp.max(pred, axis=1, keepdims=True)
    lse = m + jnp.log(jnp.sum(jnp.exp(pred - m), axis=1, keepdims=True))
    out_ref[...] = pred - lse


def lstm_network_forward(x, packed_params, out_features):
    """x: (seq_len, in_features) f32.  Returns (seq_len, out_features) f32."""
    wih_t, whh_t, bias, wlin_t, blin = packed_params
    T, in_features = x.shape
    Hp = whh_t.shape[0]
    OUTp = wlin_t.shape[1]

    full = lambda shp: pl.BlockSpec(shp, lambda i: (0, 0))

    y_pad = pl.pallas_call(
        _lstm_kernel,
        out_shape=jax.ShapeDtypeStruct((T, OUTp), jnp.float32),
        grid=(1,),
        in_specs=[
            full((T, in_features)),        # x
            full((in_features, 4 * Hp)),   # W_ih^T (gate-aligned, bf16)
            full((Hp, 4 * Hp)),            # W_hh^T (gate-aligned, bf16)
            full((1, 4 * Hp)),             # b_ih + b_hh (f32)
            full((Hp, OUTp)),              # W_lin^T (bf16)
            full((1, OUTp)),               # b_lin (f32, pads = -1e30)
        ],
        out_specs=full((T, OUTp)),
        scratch_shapes=[
            pltpu.VMEM((T, 4 * Hp), jnp.float32),  # xproj
            pltpu.VMEM((T, Hp), jnp.float32),      # all h_t
        ],
        compiler_params=pltpu.CompilerParams(
            dimension_semantics=("arbitrary",)),
    )(x, wih_t, whh_t, bias, wlin_t, blin)
    return y_pad[:, :out_features]


def init_params(key, in_features, hidden_sz, out_features):
    """PyTorch-shaped raw params, U(-1/sqrt(H), 1/sqrt(H)) like nn.LSTM/Linear."""
    ks = jax.random.split(key, 6)
    k = 1.0 / jnp.sqrt(jnp.float32(hidden_sz))
    u = lambda kk, shp: jax.random.uniform(kk, shp, jnp.float32, -k, k)
    w_ih = u(ks[0], (4 * hidden_sz, in_features))   # nn.LSTM weight_ih_l0
    w_hh = u(ks[1], (4 * hidden_sz, hidden_sz))     # nn.LSTM weight_hh_l0
    b_ih = u(ks[2], (4 * hidden_sz,))               # nn.LSTM bias_ih_l0
    b_hh = u(ks[3], (4 * hidden_sz,))               # nn.LSTM bias_hh_l0
    w_lin = u(ks[4], (out_features, hidden_sz))     # nn.Linear weight
    b_lin = u(ks[5], (out_features,))               # nn.Linear bias
    return (w_ih, w_hh, b_ih, b_hh, w_lin, b_lin)


def _pad_gate_cols(w_t, H, Hp):
    """(K, 4H) -> (K, 4Hp): each gate block starts at a 128-lane-aligned offset."""
    blocks = []
    for g in range(4):
        blk = w_t[:, g * H:(g + 1) * H]
        blocks.append(jnp.pad(blk, ((0, 0), (0, Hp - H))))
    return jnp.concatenate(blocks, axis=1)


def pack_params(raw, hidden_sz, out_features):
    """Pure layout glue: transpose, 128-lane gate alignment, pad, bf16 weights."""
    w_ih, w_hh, b_ih, b_hh, w_lin, b_lin = raw
    H = hidden_sz
    Hp = _round_up(H, _LANE)
    OUTp = _round_up(out_features, _LANE)

    wih_t = _pad_gate_cols(w_ih.T, H, Hp).astype(jnp.bfloat16)            # (in, 4Hp)
    whh_t = _pad_gate_cols(jnp.pad(w_hh.T, ((0, Hp - H), (0, 0))),
                           H, Hp).astype(jnp.bfloat16)                    # (Hp, 4Hp)
    bias = _pad_gate_cols((b_ih + b_hh).reshape(1, 4 * H),
                          H, Hp).astype(jnp.float32)                      # (1, 4Hp)
    wlin_t = jnp.pad(w_lin.T, ((0, Hp - H), (0, OUTp - out_features))
                     ).astype(jnp.bfloat16)                               # (Hp, OUTp)
    blin = jnp.pad(b_lin.reshape(1, out_features),
                   ((0, 0), (0, OUTp - out_features)),
                   constant_values=_NEG_INF).astype(jnp.float32)          # (1, OUTp)
    return (wih_t, whh_t, bias, wlin_t, blin)


def reference_forward(x, raw):
    """Pure-JAX f32 reference matching the PyTorch module (zero initial state)."""
    w_ih, w_hh, b_ih, b_hh, w_lin, b_lin = raw
    H = w_hh.shape[1]

    def step(carry, x_t):
        h, c = carry
        g = x_t @ w_ih.T + h @ w_hh.T + b_ih + b_hh
        i = jax.nn.sigmoid(g[0 * H:1 * H])
        f = jax.nn.sigmoid(g[1 * H:2 * H])
        gg = jnp.tanh(g[2 * H:3 * H])
        o = jax.nn.sigmoid(g[3 * H:4 * H])
        c = f * c + i * gg
        h = o * jnp.tanh(c)
        return (h, c), h

    (_, _), hs = lax.scan(step, (jnp.zeros((H,), jnp.float32),) * 2, x)
    pred = hs @ w_lin.T + b_lin
    return jax.nn.log_softmax(pred, axis=1)


if __name__ == "__main__":
    # TODO(synk): the PyTorch module keeps self.hidden across forward calls;
    # here each call starts from the zero hidden state (as on the first call).
    seq_len, in_features, hidden_sz, out_features = 8, 16, 6, 2

    key = jax.random.PRNGKey(0)
    k_x, k_p = jax.random.split(key)
    x = jax.random.normal(k_x, (seq_len, in_features), dtype=jnp.float32)
    raw = init_params(k_p, in_features, hidden_sz, out_features)
    packed = pack_params(raw, hidden_sz, out_features)

    y = lstm_network_forward(x, packed, out_features)
    y = jax.block_until_ready(y)

    assert y.shape == (seq_len, out_features)
    assert y.dtype == jnp.float32
    # log_softmax rows must exp-sum to 1.
    assert jnp.allclose(jnp.sum(jnp.exp(y), axis=1), 1.0, atol=1e-5)
    # Match the pure-f32 reference (kernel uses bf16 weights -> loose tolerance).
    y_ref = reference_forward(x, raw)
    assert jnp.allclose(y, y_ref, atol=5e-2), float(jnp.max(jnp.abs(y - y_ref)))

    print("KERNEL_OK")
</pallas_src>

<mosaic_0001>
module attributes {stable_mosaic.version = 11 : i64} {
  func.func @_lstm_kernel(%arg0: i32, %arg1: memref<8x16xf32, #tpu.memory_space<vmem>>, %arg2: memref<16x512xbf16, #tpu.memory_space<vmem>>, %arg3: memref<128x512xbf16, #tpu.memory_space<vmem>>, %arg4: memref<1x512xf32, #tpu.memory_space<vmem>>, %arg5: memref<128x128xbf16, #tpu.memory_space<vmem>>, %arg6: memref<1x128xf32, #tpu.memory_space<vmem>>, %arg7: memref<8x128xf32, #tpu.memory_space<vmem>>, %arg8: memref<8x512xf32, #tpu.memory_space<vmem>>, %arg9: memref<8x128xf32, #tpu.memory_space<vmem>>) attributes {dimension_semantics = [#tpu.dimension_semantics<arbitrary>], iteration_bounds = array<i64: 1>, scalar_prefetch = 0 : i64, scratch_operands = 2 : i64, tpu.core_type = #tpu.core_type<tc>, window_params = [{pipeline_mode = #tpu.pipeline_mode<synchronous>, transform_indices = @transform_0, window_bounds = array<i64: 8, 16>}, {pipeline_mode = #tpu.pipeline_mode<synchronous>, transform_indices = @transform_1, window_bounds = array<i64: 16, 512>}, {pipeline_mode = #tpu.pipeline_mode<synchronous>, transform_indices = @transform_2, window_bounds = array<i64: 128, 512>}, {pipeline_mode = #tpu.pipeline_mode<synchronous>, transform_indices = @transform_3, window_bounds = array<i64: 1, 512>}, {pipeline_mode = #tpu.pipeline_mode<synchronous>, transform_indices = @transform_4, window_bounds = array<i64: 128, 128>}, {pipeline_mode = #tpu.pipeline_mode<synchronous>, transform_indices = @transform_5, window_bounds = array<i64: 1, 128>}, {pipeline_mode = #tpu.pipeline_mode<synchronous>, transform_indices = @transform_6, window_bounds = array<i64: 8, 128>}]} {
    %c0 = arith.constant 0 : index
    %c0_0 = arith.constant 0 : index
    %0 = vector.load %arg1[%c0, %c0_0] : memref<8x16xf32, #tpu.memory_space<vmem>>, vector<8x16xf32>
    %1 = arith.truncf %0 : vector<8x16xf32> to vector<8x16xbf16>
    %c0_1 = arith.constant 0 : index
    %c0_2 = arith.constant 0 : index
    %2 = vector.load %arg2[%c0_1, %c0_2] : memref<16x512xbf16, #tpu.memory_space<vmem>>, vector<16x512xbf16>
    %cst = arith.constant dense<0.000000e+00> : vector<8x512xf32>
    %3 = tpu.matmul %1, %2, %cst {dimension_numbers = #tpu.dot_dimension_numbers<[1], [0], [0], [1], [0, 0, 1, 1], [], []>} : vector<8x16xbf16>, vector<16x512xbf16>, vector<8x512xf32> -> vector<8x512xf32>
    %c0_3 = arith.constant 0 : index
    %c0_4 = arith.constant 0 : index
    %4 = vector.load %arg4[%c0_3, %c0_4] : memref<1x512xf32, #tpu.memory_space<vmem>>, vector<1x512xf32>
    %5 = vector.broadcast %4 : vector<1x512xf32> to vector<8x512xf32>
    %6 = arith.addf %3, %5 : vector<8x512xf32>
    %c0_5 = arith.constant 0 : index
    %c0_6 = arith.constant 0 : index
    %7 = vector.load %arg8[%c0_5, %c0_6] : memref<8x512xf32, #tpu.memory_space<vmem>>, vector<8x512xf32>
    tpu.vector_store %arg8[%c0_5, %c0_6], %6 {strides = array<i32>} : memref<8x512xf32, #tpu.memory_space<vmem>>, vector<8x512xf32>,
    %c0_7 = arith.constant 0 : index
    %c0_8 = arith.constant 0 : index
    %8 = vector.load %arg3[%c0_7, %c0_8] : memref<128x512xbf16, #tpu.memory_space<vmem>>, vector<128x512xbf16>
    %cst_9 = arith.constant 0.000000e+00 : f32
    %9 = vector.broadcast %cst_9 : f32 to vector<1x128xf32>
    %c0_i32 = arith.constant 0 : i32
    %10 = arith.index_cast %c0_i32 : i32 to index
    %c0_10 = arith.constant 0 : index
    %11 = vector.load %arg8[%10, %c0_10] : memref<8x512xf32, #tpu.memory_space<vmem>>, vector<1x512xf32>
    %12 = arith.truncf %9 : vector<1x128xf32> to vector<1x128xbf16>
    %cst_11 = arith.constant dense<0.000000e+00> : vector<1x512xf32>
    %13 = tpu.matmul %12, %8, %cst_11 {dimension_numbers = #tpu.dot_dimension_numbers<[1], [0], [0], [1], [0, 0, 1, 1], [], []>} : vector<1x128xbf16>, vector<128x512xbf16>, vector<1x512xf32> -> vector<1x512xf32>
    %14 = arith.addf %11, %13 : vector<1x512xf32>
    %15 = vector.extract_strided_slice %14 {offsets = [0, 0], sizes = [1, 128], strides = [1, 1]} : vector<1x512xf32> to vector<1x128xf32>
    %16 = arith.negf %15 : vector<1x128xf32>
    %17 = math.exp %16 : vector<1x128xf32>
    %cst_12 = arith.constant 1.000000e+00 : f32
    %18 = vector.broadcast %cst_12 : f32 to vector<1x128xf32>
    %19 = arith.addf %18, %17 : vector<1x128xf32>
    %20 = arith.divf %18, %19 : vector<1x128xf32>
    %21 = vector.extract_strided_slice %14 {offsets = [0, 128], sizes = [1, 128], strides = [1, 1]} : vector<1x512xf32> to vector<1x128xf32>
    %22 = arith.negf %21 : vector<1x128xf32>
    %23 = math.exp %22 : vector<1x128xf32>
    %cst_13 = arith.constant 1.000000e+00 : f32
    %24 = vector.broadcast %cst_13 : f32 to vector<1x128xf32>
    %25 = arith.addf %24, %23 : vector<1x128xf32>
    %26 = arith.divf %24, %25 : vector<1x128xf32>
    %27 = vector.extract_strided_slice %14 {offsets = [0, 256], sizes = [1, 128], strides = [1, 1]} : vector<1x512xf32> to vector<1x128xf32>
    %28 = math.tanh %27 : vector<1x128xf32>
    %29 = vector.extract_strided_slice %14 {offsets = [0, 384], sizes = [1, 128], strides = [1, 1]} : vector<1x512xf32> to vector<1x128xf32>
    %30 = arith.negf %29 : vector<1x128xf32>
    %31 = math.exp %30 : vector<1x128xf32>
    %cst_14 = arith.constant 1.000000e+00 : f32
    %32 = vector.broadcast %cst_14 : f32 to vector<1x128xf32>
    %33 = arith.addf %32, %31 : vector<1x128xf32>
    %34 = arith.divf %32, %33 : vector<1x128xf32>
    %35 = arith.mulf %26, %9 : vector<1x128xf32>
    %36 = arith.mulf %20, %28 : vector<1x128xf32>
    %37 = arith.addf %35, %36 : vector<1x128xf32>
    %38 = math.tanh %37 : vector<1x128xf32>
    %39 = arith.mulf %34, %38 : vector<1x128xf32>
    %40 = arith.index_cast %c0_i32 : i32 to index
    %c0_15 = arith.constant 0 : index
    %41 = vector.load %arg9[%40, %c0_15] : memref<8x128xf32, #tpu.memory_space<vmem>>, vector<1x128xf32>
    tpu.vector_store %arg9[%40, %c0_15], %39 {strides = array<i32>} : memref<8x128xf32, #tpu.memory_space<vmem>>, vector<1x128xf32>,
    %c1_i32 = arith.constant 1 : i32
    %42 = arith.index_cast %c1_i32 : i32 to index
    %c0_16 = arith.constant 0 : index
    %43 = vector.load %arg8[%42, %c0_16] : memref<8x512xf32, #tpu.memory_space<vmem>>, vector<1x512xf32>
    %44 = arith.truncf %39 : vector<1x128xf32> to vector<1x128xbf16>
    %cst_17 = arith.constant dense<0.000000e+00> : vector<1x512xf32>
    %45 = tpu.matmul %44, %8, %cst_17 {dimension_numbers = #tpu.dot_dimension_numbers<[1], [0], [0], [1], [0, 0, 1, 1], [], []>} : vector<1x128xbf16>, vector<128x512xbf16>, vector<1x512xf32> -> vector<1x512xf32>
    %46 = arith.addf %43, %45 : vector<1x512xf32>
    %47 = vector.extract_strided_slice %46 {offsets = [0, 0], sizes = [1, 128], strides = [1, 1]} : vector<1x512xf32> to vector<1x128xf32>
    %48 = arith.negf %47 : vector<1x128xf32>
    %49 = math.exp %48 : vector<1x128xf32>
    %cst_18 = arith.constant 1.000000e+00 : f32
    %50 = vector.broadcast %cst_18 : f32 to vector<1x128xf32>
    %51 = arith.addf %50, %49 : vector<1x128xf32>
    %52 = arith.divf %50, %51 : vector<1x128xf32>
    %53 = vector.extract_strided_slice %46 {offsets = [0, 128], sizes = [1, 128], strides = [1, 1]} : vector<1x512xf32> to vector<1x128xf32>
    %54 = arith.negf %53 : vector<1x128xf32>
    %55 = math.exp %54 : vector<1x128xf32>
    %cst_19 = arith.constant 1.000000e+00 : f32
    %56 = vector.broadcast %cst_19 : f32 to vector<1x128xf32>
    %57 = arith.addf %56, %55 : vector<1x128xf32>
    %58 = arith.divf %56, %57 : vector<1x128xf32>
    %59 = vector.extract_strided_slice %46 {offsets = [0, 256], sizes = [1, 128], strides = [1, 1]} : vector<1x512xf32> to vector<1x128xf32>
    %60 = math.tanh %59 : vector<1x128xf32>
    %61 = vector.extract_strided_slice %46 {offsets = [0, 384], sizes = [1, 128], strides = [1, 1]} : vector<1x512xf32> to vector<1x128xf32>
    %62 = arith.negf %61 : vector<1x128xf32>
    %63 = math.exp %62 : vector<1x128xf32>
    %cst_20 = arith.constant 1.000000e+00 : f32
    %64 = vector.broadcast %cst_20 : f32 to vector<1x128xf32>
    %65 = arith.addf %64, %63 : vector<1x128xf32>
    %66 = arith.divf %64, %65 : vector<1x128xf32>
    %67 = arith.mulf %58, %37 : vector<1x128xf32>
    %68 = arith.mulf %52, %60 : vector<1x128xf32>
    %69 = arith.addf %67, %68 : vector<1x128xf32>
    %70 = math.tanh %69 : vector<1x128xf32>
    %71 = arith.mulf %66, %70 : vector<1x128xf32>
    %72 = arith.index_cast %c1_i32 : i32 to index
    %c0_21 = arith.constant 0 : index
    %73 = vector.load %arg9[%72, %c0_21] : memref<8x128xf32, #tpu.memory_space<vmem>>, vector<1x128xf32>
    tpu.vector_store %arg9[%72, %c0_21], %71 {strides = array<i32>} : memref<8x128xf32, #tpu.memory_space<vmem>>, vector<1x128xf32>,
    %c2_i32 = arith.constant 2 : i32
    %74 = arith.index_cast %c2_i32 : i32 to index
    %c0_22 = arith.constant 0 : index
    %75 = vector.load %arg8[%74, %c0_22] : memref<8x512xf32, #tpu.memory_space<vmem>>, vector<1x512xf32>
    %76 = arith.truncf %71 : vector<1x128xf32> to vector<1x128xbf16>
    %cst_23 = arith.constant dense<0.000000e+00> : vector<1x512xf32>
    %77 = tpu.matmul %76, %8, %cst_23 {dimension_numbers = #tpu.dot_dimension_numbers<[1], [0], [0], [1], [0, 0, 1, 1], [], []>} : vector<1x128xbf16>, vector<128x512xbf16>, vector<1x512xf32> -> vector<1x512xf32>
    %78 = arith.addf %75, %77 : vector<1x512xf32>
    %79 = vector.extract_strided_slice %78 {offsets = [0, 0], sizes = [1, 128], strides = [1, 1]} : vector<1x512xf32> to vector<1x128xf32>
    %80 = arith.negf %79 : vector<1x128xf32>
    %81 = math.exp %80 : vector<1x128xf32>
    %cst_24 = arith.constant 1.000000e+00 : f32
    %82 = vector.broadcast %cst_24 : f32 to vector<1x128xf32>
    %83 = arith.addf %82, %81 : vector<1x128xf32>
    %84 = arith.divf %82, %83 : vector<1x128xf32>
    %85 = vector.extract_strided_slice %78 {offsets = [0, 128], sizes = [1, 128], strides = [1, 1]} : vector<1x512xf32> to vector<1x128xf32>
    %86 = arith.negf %85 : vector<1x128xf32>
    %87 = math.exp %86 : vector<1x128xf32>
    %cst_25 = arith.constant 1.000000e+00 : f32
    %88 = vector.broadcast %cst_25 : f32 to vector<1x128xf32>
    %89 = arith.addf %88, %87 : vector<1x128xf32>
    %90 = arith.divf %88, %89 : vector<1x128xf32>
    %91 = vector.extract_strided_slice %78 {offsets = [0, 256], sizes = [1, 128], strides = [1, 1]} : vector<1x512xf32> to vector<1x128xf32>
    %92 = math.tanh %91 : vector<1x128xf32>
    %93 = vector.extract_strided_slice %78 {offsets = [0, 384], sizes = [1, 128], strides = [1, 1]} : vector<1x512xf32> to vector<1x128xf32>
    %94 = arith.negf %93 : vector<1x128xf32>
    %95 = math.exp %94 : vector<1x128xf32>
    %cst_26 = arith.constant 1.000000e+00 : f32
    %96 = vector.broadcast %cst_26 : f32 to vector<1x128xf32>
    %97 = arith.addf %96, %95 : vector<1x128xf32>
    %98 = arith.divf %96, %97 : vector<1x128xf32>
    %99 = arith.mulf %90, %69 : vector<1x128xf32>
    %100 = arith.mulf %84, %92 : vector<1x128xf32>
    %101 = arith.addf %99, %100 : vector<1x128xf32>
    %102 = math.tanh %101 : vector<1x128xf32>
    %103 = arith.mulf %98, %102 : vector<1x128xf32>
    %104 = arith.index_cast %c2_i32 : i32 to index
    %c0_27 = arith.constant 0 : index
    %105 = vector.load %arg9[%104, %c0_27] : memref<8x128xf32, #tpu.memory_space<vmem>>, vector<1x128xf32>
    tpu.vector_store %arg9[%104, %c0_27], %103 {strides = array<i32>} : memref<8x128xf32, #tpu.memory_space<vmem>>, vector<1x128xf32>,
    %c3_i32 = arith.constant 3 : i32
    %106 = arith.index_cast %c3_i32 : i32 to index
    %c0_28 = arith.constant 0 : index
    %107 = vector.load %arg8[%106, %c0_28] : memref<8x512xf32, #tpu.memory_space<vmem>>, vector<1x512xf32>
    %108 = arith.truncf %103 : vector<1x128xf32> to vector<1x128xbf16>
    %cst_29 = arith.constant dense<0.000000e+00> : vector<1x512xf32>
    %109 = tpu.matmul %108, %8, %cst_29 {dimension_numbers = #tpu.dot_dimension_numbers<[1], [0], [0], [1], [0, 0, 1, 1], [], []>} : vector<1x128xbf16>, vector<128x512xbf16>, vector<1x512xf32> -> vector<1x512xf32>
    %110 = arith.addf %107, %109 : vector<1x512xf32>
    %111 = vector.extract_strided_slice %110 {offsets = [0, 0], sizes = [1, 128], strides = [1, 1]} : vector<1x512xf32> to vector<1x128xf32>
    %112 = arith.negf %111 : vector<1x128xf32>
    %113 = math.exp %112 : vector<1x128xf32>
    %cst_30 = arith.constant 1.000000e+00 : f32
    %114 = vector.broadcast %cst_30 : f32 to vector<1x128xf32>
    %115 = arith.addf %114, %113 : vector<1x128xf32>
    %116 = arith.divf %114, %115 : vector<1x128xf32>
    %117 = vector.extract_strided_slice %110 {offsets = [0, 128], sizes = [1, 128], strides = [1, 1]} : vector<1x512xf32> to vector<1x128xf32>
    %118 = arith.negf %117 : vector<1x128xf32>
    %119 = math.exp %118 : vector<1x128xf32>
    %cst_31 = arith.constant 1.000000e+00 : f32
    %120 = vector.broadcast %cst_31 : f32 to vector<1x128xf32>
    %121 = arith.addf %120, %119 : vector<1x128xf32>
    %122 = arith.divf %120, %121 : vector<1x128xf32>
    %123 = vector.extract_strided_slice %110 {offsets = [0, 256], sizes = [1, 128], strides = [1, 1]} : vector<1x512xf32> to vector<1x128xf32>
    %124 = math.tanh %123 : vector<1x128xf32>
    %125 = vector.extract_strided_slice %110 {offsets = [0, 384], sizes = [1, 128], strides = [1, 1]} : vector<1x512xf32> to vector<1x128xf32>
    %126 = arith.negf %125 : vector<1x128xf32>
    %127 = math.exp %126 : vector<1x128xf32>
    %cst_32 = arith.constant 1.000000e+00 : f32
    %128 = vector.broadcast %cst_32 : f32 to vector<1x128xf32>
    %129 = arith.addf %128, %127 : vector<1x128xf32>
    %130 = arith.divf %128, %129 : vector<1x128xf32>
    %131 = arith.mulf %122, %101 : vector<1x128xf32>
    %132 = arith.mulf %116, %124 : vector<1x128xf32>
    %133 = arith.addf %131, %132 : vector<1x128xf32>
    %134 = math.tanh %133 : vector<1x128xf32>
    %135 = arith.mulf %130, %134 : vector<1x128xf32>
    %136 = arith.index_cast %c3_i32 : i32 to index
    %c0_33 = arith.constant 0 : index
    %137 = vector.load %arg9[%136, %c0_33] : memref<8x128xf32, #tpu.memory_space<vmem>>, vector<1x128xf32>
    tpu.vector_store %arg9[%136, %c0_33], %135 {strides = array<i32>} : memref<8x128xf32, #tpu.memory_space<vmem>>, vector<1x128xf32>,
    %c4_i32 = arith.constant 4 : i32
    %138 = arith.index_cast %c4_i32 : i32 to index
    %c0_34 = arith.constant 0 : index
    %139 = vector.load %arg8[%138, %c0_34] : memref<8x512xf32, #tpu.memory_space<vmem>>, vector<1x512xf32>
    %140 = arith.truncf %135 : vector<1x128xf32> to vector<1x128xbf16>
    %cst_35 = arith.constant dense<0.000000e+00> : vector<1x512xf32>
    %141 = tpu.matmul %140, %8, %cst_35 {dimension_numbers = #tpu.dot_dimension_numbers<[1], [0], [0], [1], [0, 0, 1, 1], [], []>} : vector<1x128xbf16>, vector<128x512xbf16>, vector<1x512xf32> -> vector<1x512xf32>
    %142 = arith.addf %139, %141 : vector<1x512xf32>
    %143 = vector.extract_strided_slice %142 {offsets = [0, 0], sizes = [1, 128], strides = [1, 1]} : vector<1x512xf32> to vector<1x128xf32>
    %144 = arith.negf %143 : vector<1x128xf32>
    %145 = math.exp %144 : vector<1x128xf32>
    %cst_36 = arith.constant 1.000000e+00 : f32
    %146 = vector.broadcast %cst_36 : f32 to vector<1x128xf32>
    %147 = arith.addf %146, %145 : vector<1x128xf32>
    %148 = arith.divf %146, %147 : vector<1x128xf32>
    %149 = vector.extract_strided_slice %142 {offsets = [0, 128], sizes = [1, 128], strides = [1, 1]} : vector<1x512xf32> to vector<1x128xf32>
    %150 = arith.negf %149 : vector<1x128xf32>
    %151 = math.exp %150 : vector<1x128xf32>
    %cst_37 = arith.constant 1.000000e+00 : f32
    %152 = vector.broadcast %cst_37 : f32 to vector<1x128xf32>
    %153 = arith.addf %152, %151 : vector<1x128xf32>
    %154 = arith.divf %152, %153 : vector<1x128xf32>
    %155 = vector.extract_strided_slice %142 {offsets = [0, 256], sizes = [1, 128], strides = [1, 1]} : vector<1x512xf32> to vector<1x128xf32>
    %156 = math.tanh %155 : vector<1x128xf32>
    %157 = vector.extract_strided_slice %142 {offsets = [0, 384], sizes = [1, 128], strides = [1, 1]} : vector<1x512xf32> to vector<1x128xf32>
    %158 = arith.negf %157 : vector<1x128xf32>
    %159 = math.exp %158 : vector<1x128xf32>
    %cst_38 = arith.constant 1.000000e+00 : f32
    %160 = vector.broadcast %cst_38 : f32 to vector<1x128xf32>
    %161 = arith.addf %160, %159 : vector<1x128xf32>
    %162 = arith.divf %160, %161 : vector<1x128xf32>
    %163 = arith.mulf %154, %133 : vector<1x128xf32>
    %164 = arith.mulf %148, %156 : vector<1x128xf32>
    %165 = arith.addf %163, %164 : vector<1x128xf32>
    %166 = math.tanh %165 : vector<1x128xf32>
    %167 = arith.mulf %162, %166 : vector<1x128xf32>
    %168 = arith.index_cast %c4_i32 : i32 to index
    %c0_39 = arith.constant 0 : index
    %169 = vector.load %arg9[%168, %c0_39] : memref<8x128xf32, #tpu.memory_space<vmem>>, vector<1x128xf32>
    tpu.vector_store %arg9[%168, %c0_39], %167 {strides = array<i32>} : memref<8x128xf32, #tpu.memory_space<vmem>>, vector<1x128xf32>,
    %c5_i32 = arith.constant 5 : i32
    %170 = arith.index_cast %c5_i32 : i32 to index
    %c0_40 = arith.constant 0 : index
    %171 = vector.load %arg8[%170, %c0_40] : memref<8x512xf32, #tpu.memory_space<vmem>>, vector<1x512xf32>
    %172 = arith.truncf %167 : vector<1x128xf32> to vector<1x128xbf16>
    %cst_41 = arith.constant dense<0.000000e+00> : vector<1x512xf32>
    %173 = tpu.matmul %172, %8, %cst_41 {dimension_numbers = #tpu.dot_dimension_numbers<[1], [0], [0], [1], [0, 0, 1, 1], [], []>} : vector<1x128xbf16>, vector<128x512xbf16>, vector<1x512xf32> -> vector<1x512xf32>
    %174 = arith.addf %171, %173 : vector<1x512xf32>
    %175 = vector.extract_strided_slice %174 {offsets = [0, 0], sizes = [1, 128], strides = [1, 1]} : vector<1x512xf32> to vector<1x128xf32>
    %176 = arith.negf %175 : vector<1x128xf32>
    %177 = math.exp %176 : vector<1x128xf32>
    %cst_42 = arith.constant 1.000000e+00 : f32
    %178 = vector.broadcast %cst_42 : f32 to vector<1x128xf32>
    %179 = arith.addf %178, %177 : vector<1x128xf32>
    %180 = arith.divf %178, %179 : vector<1x128xf32>
    %181 = vector.extract_strided_slice %174 {offsets = [0, 128], sizes = [1, 128], strides = [1, 1]} : vector<1x512xf32> to vector<1x128xf32>
    %182 = arith.negf %181 : vector<1x128xf32>
    %183 = math.exp %182 : vector<1x128xf32>
    %cst_43 = arith.constant 1.000000e+00 : f32
    %184 = vector.broadcast %cst_43 : f32 to vector<1x128xf32>
    %185 = arith.addf %184, %183 : vector<1x128xf32>
    %186 = arith.divf %184, %185 : vector<1x128xf32>
    %187 = vector.extract_strided_slice %174 {offsets = [0, 256], sizes = [1, 128], strides = [1, 1]} : vector<1x512xf32> to vector<1x128xf32>
    %188 = math.tanh %187 : vector<1x128xf32>
    %189 = vector.extract_strided_slice %174 {offsets = [0, 384], sizes = [1, 128], strides = [1, 1]} : vector<1x512xf32> to vector<1x128xf32>
    %190 = arith.negf %189 : vector<1x128xf32>
    %191 = math.exp %190 : vector<1x128xf32>
    %cst_44 = arith.constant 1.000000e+00 : f32
    %192 = vector.broadcast %cst_44 : f32 to vector<1x128xf32>
    %193 = arith.addf %192, %191 : vector<1x128xf32>
    %194 = arith.divf %192, %193 : vector<1x128xf32>
    %195 = arith.mulf %186, %165 : vector<1x128xf32>
    %196 = arith.mulf %180, %188 : vector<1x128xf32>
    %197 = arith.addf %195, %196 : vector<1x128xf32>
    %198 = math.tanh %197 : vector<1x128xf32>
    %199 = arith.mulf %194, %198 : vector<1x128xf32>
    %200 = arith.index_cast %c5_i32 : i32 to index
    %c0_45 = arith.constant 0 : index
    %201 = vector.load %arg9[%200, %c0_45] : memref<8x128xf32, #tpu.memory_space<vmem>>, vector<1x128xf32>
    tpu.vector_store %arg9[%200, %c0_45], %199 {strides = array<i32>} : memref<8x128xf32, #tpu.memory_space<vmem>>, vector<1x128xf32>,
    %c6_i32 = arith.constant 6 : i32
    %202 = arith.index_cast %c6_i32 : i32 to index
    %c0_46 = arith.constant 0 : index
    %203 = vector.load %arg8[%202, %c0_46] : memref<8x512xf32, #tpu.memory_space<vmem>>, vector<1x512xf32>
    %204 = arith.truncf %199 : vector<1x128xf32> to vector<1x128xbf16>
    %cst_47 = arith.constant dense<0.000000e+00> : vector<1x512xf32>
    %205 = tpu.matmul %204, %8, %cst_47 {dimension_numbers = #tpu.dot_dimension_numbers<[1], [0], [0], [1], [0, 0, 1, 1], [], []>} : vector<1x128xbf16>, vector<128x512xbf16>, vector<1x512xf32> -> vector<1x512xf32>
    %206 = arith.addf %203, %205 : vector<1x512xf32>
    %207 = vector.extract_strided_slice %206 {offsets = [0, 0], sizes = [1, 128], strides = [1, 1]} : vector<1x512xf32> to vector<1x128xf32>
    %208 = arith.negf %207 : vector<1x128xf32>
    %209 = math.exp %208 : vector<1x128xf32>
    %cst_48 = arith.constant 1.000000e+00 : f32
    %210 = vector.broadcast %cst_48 : f32 to vector<1x128xf32>
    %211 = arith.addf %210, %209 : vector<1x128xf32>
    %212 = arith.divf %210, %211 : vector<1x128xf32>
    %213 = vector.extract_strided_slice %206 {offsets = [0, 128], sizes = [1, 128], strides = [1, 1]} : vector<1x512xf32> to vector<1x128xf32>
    %214 = arith.negf %213 : vector<1x128xf32>
    %215 = math.exp %214 : vector<1x128xf32>
    %cst_49 = arith.constant 1.000000e+00 : f32
    %216 = vector.broadcast %cst_49 : f32 to vector<1x128xf32>
    %217 = arith.addf %216, %215 : vector<1x128xf32>
    %218 = arith.divf %216, %217 : vector<1x128xf32>
    %219 = vector.extract_strided_slice %206 {offsets = [0, 256], sizes = [1, 128], strides = [1, 1]} : vector<1x512xf32> to vector<1x128xf32>
    %220 = math.tanh %219 : vector<1x128xf32>
    %221 = vector.extract_strided_slice %206 {offsets = [0, 384], sizes = [1, 128], strides = [1, 1]} : vector<1x512xf32> to vector<1x128xf32>
    %222 = arith.negf %221 : vector<1x128xf32>
    %223 = math.exp %222 : vector<1x128xf32>
    %cst_50 = arith.constant 1.000000e+00 : f32
    %224 = vector.broadcast %cst_50 : f32 to vector<1x128xf32>
    %225 = arith.addf %224, %223 : vector<1x128xf32>
    %226 = arith.divf %224, %225 : vector<1x128xf32>
    %227 = arith.mulf %218, %197 : vector<1x128xf32>
    %228 = arith.mulf %212, %220 : vector<1x128xf32>
    %229 = arith.addf %227, %228 : vector<1x128xf32>
    %230 = math.tanh %229 : vector<1x128xf32>
    %231 = arith.mulf %226, %230 : vector<1x128xf32>
    %232 = arith.index_cast %c6_i32 : i32 to index
    %c0_51 = arith.constant 0 : index
    %233 = vector.load %arg9[%232, %c0_51] : memref<8x128xf32, #tpu.memory_space<vmem>>, vector<1x128xf32>
    tpu.vector_store %arg9[%232, %c0_51], %231 {strides = array<i32>} : memref<8x128xf32, #tpu.memory_space<vmem>>, vector<1x128xf32>,
    %c7_i32 = arith.constant 7 : i32
    %234 = arith.index_cast %c7_i32 : i32 to index
    %c0_52 = arith.constant 0 : index
    %235 = vector.load %arg8[%234, %c0_52] : memref<8x512xf32, #tpu.memory_space<vmem>>, vector<1x512xf32>
    %236 = arith.truncf %231 : vector<1x128xf32> to vector<1x128xbf16>
    %cst_53 = arith.constant dense<0.000000e+00> : vector<1x512xf32>
    %237 = tpu.matmul %236, %8, %cst_53 {dimension_numbers = #tpu.dot_dimension_numbers<[1], [0], [0], [1], [0, 0, 1, 1], [], []>} : vector<1x128xbf16>, vector<128x512xbf16>, vector<1x512xf32> -> vector<1x512xf32>
    %238 = arith.addf %235, %237 : vector<1x512xf32>
    %239 = vector.extract_strided_slice %238 {offsets = [0, 0], sizes = [1, 128], strides = [1, 1]} : vector<1x512xf32> to vector<1x128xf32>
    %240 = arith.negf %239 : vector<1x128xf32>
    %241 = math.exp %240 : vector<1x128xf32>
    %cst_54 = arith.constant 1.000000e+00 : f32
    %242 = vector.broadcast %cst_54 : f32 to vector<1x128xf32>
    %243 = arith.addf %242, %241 : vector<1x128xf32>
    %244 = arith.divf %242, %243 : vector<1x128xf32>
    %245 = vector.extract_strided_slice %238 {offsets = [0, 128], sizes = [1, 128], strides = [1, 1]} : vector<1x512xf32> to vector<1x128xf32>
    %246 = arith.negf %245 : vector<1x128xf32>
    %247 = math.exp %246 : vector<1x128xf32>
    %cst_55 = arith.constant 1.000000e+00 : f32
    %248 = vector.broadcast %cst_55 : f32 to vector<1x128xf32>
    %249 = arith.addf %248, %247 : vector<1x128xf32>
    %250 = arith.divf %248, %249 : vector<1x128xf32>
    %251 = vector.extract_strided_slice %238 {offsets = [0, 256], sizes = [1, 128], strides = [1, 1]} : vector<1x512xf32> to vector<1x128xf32>
    %252 = math.tanh %251 : vector<1x128xf32>
    %253 = vector.extract_strided_slice %238 {offsets = [0, 384], sizes = [1, 128], strides = [1, 1]} : vector<1x512xf32> to vector<1x128xf32>
    %254 = arith.negf %253 : vector<1x128xf32>
    %255 = math.exp %254 : vector<1x128xf32>
    %cst_56 = arith.constant 1.000000e+00 : f32
    %256 = vector.broadcast %cst_56 : f32 to vector<1x128xf32>
    %257 = arith.addf %256, %255 : vector<1x128xf32>
    %258 = arith.divf %256, %257 : vector<1x128xf32>
    %259 = arith.mulf %250, %229 : vector<1x128xf32>
    %260 = arith.mulf %244, %252 : vector<1x128xf32>
    %261 = arith.addf %259, %260 : vector<1x128xf32>
    %262 = math.tanh %261 : vector<1x128xf32>
    %263 = arith.mulf %258, %262 : vector<1x128xf32>
    %264 = arith.index_cast %c7_i32 : i32 to index
    %c0_57 = arith.constant 0 : index
    %265 = vector.load %arg9[%264, %c0_57] : memref<8x128xf32, #tpu.memory_space<vmem>>, vector<1x128xf32>
    tpu.vector_store %arg9[%264, %c0_57], %263 {strides = array<i32>} : memref<8x128xf32, #tpu.memory_space<vmem>>, vector<1x128xf32>,
    %c8_i32 = arith.constant 8 : i32
    %c0_58 = arith.constant 0 : index
    %c0_59 = arith.constant 0 : index
    %266 = vector.load %arg9[%c0_58, %c0_59] : memref<8x128xf32, #tpu.memory_space<vmem>>, vector<8x128xf32>
    %267 = arith.truncf %266 : vector<8x128xf32> to vector<8x128xbf16>
    %c0_60 = arith.constant 0 : index
    %c0_61 = arith.constant 0 : index
    %268 = vector.load %arg5[%c0_60, %c0_61] : memref<128x128xbf16, #tpu.memory_space<vmem>>, vector<128x128xbf16>
    %cst_62 = arith.constant dense<0.000000e+00> : vector<8x128xf32>
    %269 = tpu.matmul %267, %268, %cst_62 {dimension_numbers = #tpu.dot_dimension_numbers<[1], [0], [0], [1], [0, 0, 1, 1], [], []>} : vector<8x128xbf16>, vector<128x128xbf16>, vector<8x128xf32> -> vector<8x128xf32>
    %c0_63 = arith.constant 0 : index
    %c0_64 = arith.constant 0 : index
    %270 = vector.load %arg6[%c0_63, %c0_64] : memref<1x128xf32, #tpu.memory_space<vmem>>, vector<1x128xf32>
    %271 = vector.broadcast %270 : vector<1x128xf32> to vector<8x128xf32>
    %272 = arith.addf %269, %271 : vector<8x128xf32>
    %cst_65 = arith.constant dense<0xFF800000> : vector<8xf32>
    %273 = vector.multi_reduction <maximumf>, %272, %cst_65 [1] : vector<8x128xf32> to vector<8xf32>
    %274 = vector.shape_cast %273 : vector<8xf32> to vector<8x1xf32>
    %275 = vector.broadcast %274 : vector<8x1xf32> to vector<8x128xf32>
    %276 = arith.subf %272, %275 : vector<8x128xf32>
    %277 = math.exp %276 : vector<8x128xf32>
    %cst_66 = arith.constant dense<0.000000e+00> : vector<8xf32>
    %278 = vector.multi_reduction <add>, %277, %cst_66 [1] : vector<8x128xf32> to vector<8xf32>
    %279 = vector.shape_cast %278 : vector<8xf32> to vector<8x1xf32>
    %280 = math.log %279 : vector<8x1xf32>
    %281 = arith.addf %274, %280 : vector<8x1xf32>
    %282 = vector.broadcast %281 : vector<8x1xf32> to vector<8x128xf32>
    %283 = arith.subf %272, %282 : vector<8x128xf32>
    %c0_67 = arith.constant 0 : index
    %c0_68 = arith.constant 0 : index
    %284 = vector.load %arg7[%c0_67, %c0_68] : memref<8x128xf32, #tpu.memory_space<vmem>>, vector<8x128xf32>
    tpu.vector_store %arg7[%c0_67, %c0_68], %283 {strides = array<i32>} : memref<8x128xf32, #tpu.memory_space<vmem>>, vector<8x128xf32>,
    return
  }
  func.func @transform_0(%arg0: i32) -> (i32, i32) {
    %c0_i32 = arith.constant 0 : i32
    %c0_i32_0 = arith.constant 0 : i32
    %c0_i32_1 = arith.constant 0 : i32
    return %c0_i32, %c0_i32_0 : i32, i32
  }
  func.func @transform_1(%arg0: i32) -> (i32, i32) {
    %c0_i32 = arith.constant 0 : i32
    %c0_i32_0 = arith.constant 0 : i32
    %c0_i32_1 = arith.constant 0 : i32
    return %c0_i32, %c0_i32_0 : i32, i32
  }
  func.func @transform_2(%arg0: i32) -> (i32, i32) {
    %c0_i32 = arith.constant 0 : i32
    %c0_i32_0 = arith.constant 0 : i32
    %c0_i32_1 = arith.constant 0 : i32
    return %c0_i32, %c0_i32_0 : i32, i32
  }
  func.func @transform_3(%arg0: i32) -> (i32, i32) {
    %c0_i32 = arith.constant 0 : i32
    %c0_i32_0 = arith.constant 0 : i32
    %c0_i32_1 = arith.constant 0 : i32
    return %c0_i32, %c0_i32_0 : i32, i32
  }
  func.func @transform_4(%arg0: i32) -> (i32, i32) {
    %c0_i32 = arith.constant 0 : i32
    %c0_i32_0 = arith.constant 0 : i32
    %c0_i32_1 = arith.constant 0 : i32
    return %c0_i32, %c0_i32_0 : i32, i32
  }
  func.func @transform_5(%arg0: i32) -> (i32, i32) {
    %c0_i32 = arith.constant 0 : i32
    %c0_i32_0 = arith.constant 0 : i32
    %c0_i32_1 = arith.constant 0 : i32
    return %c0_i32, %c0_i32_0 : i32, i32
  }
  func.func @transform_6(%arg0: i32) -> (i32, i32) {
    %c0_i32 = arith.constant 0 : i32
    %c0_i32_0 = arith.constant 0 : i32
    %c0_i32_1 = arith.constant 0 : i32
    return %c0_i32, %c0_i32_0 : i32, i32
  }
}

</mosaic_0001>

<llo_original>
// kernel: tpu_custom_call.1
$region0: #{tpu_custom_call.1}
  #allocation0 [shape = 'u32[]', space=smem, size = 0x4, offset = 0x4, fixed_abs, tag = 'smem constant byte address 0x4 - core index']
  #allocation1 [shape = 'u32[144,128]{1,0:T(1,128)}', space=vmem, size = 0x12000, scoped, tag = 'internal scratch']
  #allocation2 [shape = 'f32[8,512]{1,0:T(8,128)}', space=vmem, size = 0x4000, scoped, tag = 'scratch operand']
  #allocation3 [shape = 'f32[8,128]{1,0:T(8,128)}', space=vmem, size = 0x1000, scoped, tag = 'scratch operand']
  %s0 = inlined_call_operand.hbm [shape: f32[8,16], index: 0, kind: input, shape index: {}]
  %s1 = inlined_call_operand.hbm [shape: bf16[16,512], index: 1, kind: input, shape index: {}]
  %s2 = inlined_call_operand.hbm [shape: bf16[128,512], index: 2, kind: input, shape index: {}]
  %s3 = inlined_call_operand.vmem [shape: f32[1,512], index: 3, kind: input, shape index: {}]
  %s4 = inlined_call_operand.hbm [shape: bf16[128,128], index: 4, kind: input, shape index: {}]
  %s5 = inlined_call_operand.vmem [shape: f32[1,128], index: 5, kind: input, shape index: {}]
  %s6 = inlined_call_operand.hbm [shape: f32[8,128], index: 6, kind: output, shape index: {}]
  %s7 = sld [smem:[#allocation0]]
  $region50: #{tpu_custom_call.1} parent=0
    _
  %s9 = ssub.s32 1, %s7
  %s10 = scalar_select 0, %s9, %s7
  $region1: #{tpu_custom_call.1} parent=0
    #allocation4 [shape = 'u8[4096]{0}', space=vmem, size = 0x1000, scoped, tag = 'input window, operand 0, single buffered']
    #allocation5 [shape = 's32[1]{0}', space=sflag, size = 0x4, scoped, tag = 'scoped memory for tpu_custom_call.1']
    #allocation6 [shape = 's32[1]{0}', space=sflag, size = 0x4, scoped, tag = 'scoped memory for tpu_custom_call.1']
    #allocation7 [shape = 'u8[16384]{0}', space=vmem, size = 0x4000, scoped, tag = 'input window, operand 1, single buffered']
    #allocation8 [shape = 's32[1]{0}', space=sflag, size = 0x4, scoped, tag = 'scoped memory for tpu_custom_call.1']
    #allocation9 [shape = 'u8[131072]{0}', space=vmem, size = 0x20000, scoped, tag = 'input window, operand 2, single buffered']
    #allocation10 [shape = 'u8[32768]{0}', space=vmem, size = 0x8000, scoped, tag = 'input window, operand 4, single buffered']
    #allocation11 [shape = 's32[1]{0}', space=sflag, size = 0x4, scoped, tag = 'scoped memory for tpu_custom_call.1']
    #allocation12 [shape = 'u8[4096]{0}', space=vmem, size = 0x1000, scoped, tag = 'output window, operand 0, single buffered']
    %11 = vsyncpa [#allocation5], 0
    %12 = vsyncpa [#allocation8], 0
    %13 = vsyncpa [#allocation11], 0
    %14 = vsyncpa [#allocation6], 0
    // Predicated region
    $region2: #{tpu_custom_call.1} parent=1 // pred_check
      _
    $region3: #{tpu_custom_call.1} parent=1 // pred_check_branch
      %16 = sbr.rel (0) target = $region5
    $region4: #{tpu_custom_call.1} parent=1 // pred_region
      %s18 = ssub.s32 128, 128
      %19 = vsyncadd [#allocation5], %s18
      %s21 = sshll.u32 [#allocation4], 4
      %s22 = int_to_ptr.vmem [resolvable:$true] %s21
      %24 = dma.hbm_to_vmem [thread:$0]  %s0, 128, %s22, [#allocation5]
    $region5: #{tpu_custom_call.1} parent=1 // pred_fallthru
      _
    // Predicated region
    $region6: #{tpu_custom_call.1} parent=1 // pred_check
      _
    $region7: #{tpu_custom_call.1} parent=1 // pred_check_branch
      %26 = sbr.rel (0) target = $region9
    $region8: #{tpu_custom_call.1} parent=1 // pred_region
      %s28 = ssub.s32 512, 512
      %29 = vsyncadd [#allocation8], %s28
      %s30 = sshll.u32 [#allocation7], 4
      %s31 = int_to_ptr.vmem [resolvable:$true] %s30
      %36 = dma.hbm_to_vmem [thread:$0]  %s1, 512, %s31, [#allocation8], 256, 256, 16
    $region9: #{tpu_custom_call.1} parent=1 // pred_fallthru
      _
    // Predicated region
    $region10: #{tpu_custom_call.1} parent=1 // pred_check
      _
    $region11: #{tpu_custom_call.1} parent=1 // pred_check_branch
      %38 = sbr.rel (0) target = $region13
    $region12: #{tpu_custom_call.1} parent=1 // pred_region
      %s40 = ssub.s32 4096, 4096
      %41 = vsyncadd [#allocation8], %s40
      %s42 = sshll.u32 [#allocation9], 4
      %s43 = int_to_ptr.vmem [resolvable:$true] %s42
      %48 = dma.hbm_to_vmem [thread:$0]  %s2, 4096, %s43, [#allocation8], 256, 256, 16
    $region13: #{tpu_custom_call.1} parent=1 // pred_fallthru
      _
    // Predicated region
    $region14: #{tpu_custom_call.1} parent=1 // pred_check
      _
    $region15: #{tpu_custom_call.1} parent=1 // pred_check_branch
      %50 = sbr.rel (0) target = $region17
    $region16: #{tpu_custom_call.1} parent=1 // pred_region
      _
    $region17: #{tpu_custom_call.1} parent=1 // pred_fallthru
      _
    // Predicated region
    $region18: #{tpu_custom_call.1} parent=1 // pred_check
      _
    $region19: #{tpu_custom_call.1} parent=1 // pred_check_branch
      %52 = sbr.rel (0) target = $region21
    $region20: #{tpu_custom_call.1} parent=1 // pred_region
      %s54 = ssub.s32 1024, 1024
      %55 = vsyncadd [#allocation11], %s54
      %s56 = sshll.u32 [#allocation10], 4
      %s57 = int_to_ptr.vmem [resolvable:$true] %s56
      %62 = dma.hbm_to_vmem [thread:$0]  %s4, 1024, %s57, [#allocation11], 64, 64, 4
    $region21: #{tpu_custom_call.1} parent=1 // pred_fallthru
      _
    // Predicated region
    $region22: #{tpu_custom_call.1} parent=1 // pred_check
      _
    $region23: #{tpu_custom_call.1} parent=1 // pred_check_branch
      %64 = sbr.rel (0) target = $region25
    $region24: #{tpu_custom_call.1} parent=1 // pred_region
      _
    $region25: #{tpu_custom_call.1} parent=1 // pred_fallthru
      _
    // Predicated region
    $region26: #{tpu_custom_call.1} parent=1 // pred_check
      _
    $region27: #{tpu_custom_call.1} parent=1 // pred_check_branch
      %66 = sbr.rel (0) target = $region29
    $region28: #{tpu_custom_call.1} parent=1 // pred_region
      %67 = dma.done [#allocation5], 128
    $region29: #{tpu_custom_call.1} parent=1 // pred_fallthru
      _
    // Predicated region
    $region30: #{tpu_custom_call.1} parent=1 // pred_check
      _
    $region31: #{tpu_custom_call.1} parent=1 // pred_check_branch
      %69 = sbr.rel (0) target = $region33
    $region32: #{tpu_custom_call.1} parent=1 // pred_region
      %70 = dma.done [#allocation8], 512
    $region33: #{tpu_custom_call.1} parent=1 // pred_fallthru
      _
    // Predicated region
    $region34: #{tpu_custom_call.1} parent=1 // pred_check
      _
    $region35: #{tpu_custom_call.1} parent=1 // pred_check_branch
      %72 = sbr.rel (0) target = $region37
    $region36: #{tpu_custom_call.1} parent=1 // pred_region
      %73 = dma.done [#allocation8], 4096
    $region37: #{tpu_custom_call.1} parent=1 // pred_fallthru
      _
    // Predicated region
    $region38: #{tpu_custom_call.1} parent=1 // pred_check
      _
    $region39: #{tpu_custom_call.1} parent=1 // pred_check_branch
      %75 = sbr.rel (0) target = $region41
    $region40: #{tpu_custom_call.1} parent=1 // pred_region
      %76 = dma.done [#allocation11], 1024
    $region41: #{tpu_custom_call.1} parent=1 // pred_fallthru
      _
    %v78 = vld [vmem:[#allocation4] sm:$0xff]
    %v79 = vpack.c.bf16 %v78, %v78
    %v80 = vld [vmem:[#allocation7] sm:$0xff]
    %v81 = vld [vmem:[#allocation7 + $0x8] sm:$0xff]
    %v82 = vld [vmem:[#allocation7 + $0x10] sm:$0xff]
    %v83 = vld [vmem:[#allocation7 + $0x18] sm:$0xff]
    %v84 = vld [vmem:[%s3] sm:$0xf]
    %v86 = vlaneseq
    %v87 = vshrl.u32 %v86, 7
    %v88 = vsub.s32 0, %v87
    %v89 = vrot.slane %v84, %v88
    %v90 = vlaneseq
    %v91 = vshrl.u32 %v90, 7
    %v92 = vsub.s32 1, %v91
    %v93 = vrot.slane %v84, %v92
    %v94 = vlaneseq
    %v95 = vshrl.u32 %v94, 7
    %v96 = vsub.s32 2, %v95
    %v97 = vrot.slane %v84, %v96
    %v98 = vlaneseq
    %v99 = vshrl.u32 %v98, 7
    %v100 = vsub.s32 3, %v99
    %v101 = vrot.slane %v84, %v100
    %v110 = vunpack.c.l.b16 %v80
    %v111 = vunpack.c.h.b16 %v80
    %v112 = vunpack.c.l.b16 %v81
    %v113 = vunpack.c.h.b16 %v81
    %v114 = vunpack.c.l.b16 %v82
    %v115 = vunpack.c.h.b16 %v82
    %v116 = vunpack.c.l.b16 %v83
    %v117 = vunpack.c.h.b16 %v83
    %v118 = vpack.c.b16 %v114, %v110
    %v119 = vpack.c.b16 %v115, %v111
    %v120 = vpack.c.b16 %v116, %v112
    %v121 = vpack.c.b16 %v117, %v113
    %vm126 = vcmask 130048
    %v128 = vsel %vm126, %v79, 0
    %130 = vmatprep.subr.bf16.mxu0 %v119
    %131 = vmatpush1.bf16.msra.mxu0 %v118
    %132 = vmatprep.subr.bf16.mxu0 0
    %133 = vmatpush1.bf16.msra.mxu0 0
    %134 = vmatprep.subr.bf16.mxu0 0
    %135 = vmatpush1.bf16.msra.mxu0 0
    %136 = vmatprep.subr.bf16.mxu0 0
    %137 = vmatpush1.bf16.msra.mxu0 0
    %138 = vmatprep.subr.bf16.mxu0 0
    %139 = vmatpush1.bf16.msra.mxu0 0
    %140 = vmatprep.subr.bf16.mxu0 0
    %141 = vmatpush1.bf16.msra.mxu0 0
    %142 = vmatprep.subr.bf16.mxu0 0
    %143 = vmatpush1.bf16.msra.mxu0 0
    %144 = vmatprep.subr.bf16.mxu0 0
    %145 = vmatpush1.bf16.msra.mxu0 0
    %146 = vmatprep.subr.bf16.mxu0 0
    %147 = vmatpush1.bf16.msra.mxu0 0
    %148 = vmatprep.subr.bf16.mxu0 0
    %149 = vmatpush1.bf16.msra.mxu0 0
    %150 = vmatprep.subr.bf16.mxu0 0
    %151 = vmatpush1.bf16.msra.mxu0 0
    %152 = vmatprep.subr.bf16.mxu0 0
    %153 = vmatpush1.bf16.msra.mxu0 0
    %154 = vmatprep.subr.bf16.mxu0 0
    %155 = vmatpush1.bf16.msra.mxu0 0
    %156 = vmatprep.subr.bf16.mxu0 0
    %157 = vmatpush1.bf16.msra.mxu0 0
    %158 = vmatprep.subr.bf16.mxu0 0
    %159 = vmatpush1.bf16.msra.mxu0 0
    %160 = vmatprep.subr.bf16.mxu0 0
    %161 = vmatpush1.bf16.msra.mxu0 0
    %162 = vmatprep.mubr.bf16.mxu0 0
    %163 = vmatmul.mubr.bf16.gmra.mrb[0].mxu0 %v128
    %v164 = vpop.f32.mrb[0].mxu0
    %v165 = vadd.f32 %v89, %v164
    %v166 = vpop.f32.mrb[0].mxu0
    %v167 = vadd.f32 %v93, %v166
    %v168 = vpop.f32.mrb[0].mxu0
    %v169 = vpop.f32.mrb[0].mxu0
    %170 = vdwg.mxu0
    %171 = vmatprep.subr.bf16.mxu0 %v121
    %172 = vmatpush1.bf16.msra.mxu0 %v120
    %173 = vmatprep.subr.bf16.mxu0 0
    %174 = vmatpush1.bf16.msra.mxu0 0
    %175 = vmatprep.subr.bf16.mxu0 0
    %176 = vmatpush1.bf16.msra.mxu0 0
    %177 = vmatprep.subr.bf16.mxu0 0
    %178 = vmatpush1.bf16.msra.mxu0 0
    %179 = vmatprep.subr.bf16.mxu0 0
    %180 = vmatpush1.bf16.msra.mxu0 0
    %181 = vmatprep.subr.bf16.mxu0 0
    %182 = vmatpush1.bf16.msra.mxu0 0
    %183 = vmatprep.subr.bf16.mxu0 0
    %184 = vmatpush1.bf16.msra.mxu0 0
    %185 = vmatprep.subr.bf16.mxu0 0
    %186 = vmatpush1.bf16.msra.mxu0 0
    %187 = vmatprep.subr.bf16.mxu0 0
    %188 = vmatpush1.bf16.msra.mxu0 0
    %189 = vmatprep.subr.bf16.mxu0 0
    %190 = vmatpush1.bf16.msra.mxu0 0
    %191 = vmatprep.subr.bf16.mxu0 0
    %192 = vmatpush1.bf16.msra.mxu0 0
    %193 = vmatprep.subr.bf16.mxu0 0
    %194 = vmatpush1.bf16.msra.mxu0 0
    %195 = vmatprep.subr.bf16.mxu0 0
    %196 = vmatpush1.bf16.msra.mxu0 0
    %197 = vmatprep.subr.bf16.mxu0 0
    %198 = vmatpush1.bf16.msra.mxu0 0
    %199 = vmatprep.subr.bf16.mxu0 0
    %200 = vmatpush1.bf16.msra.mxu0 0
    %201 = vmatprep.subr.bf16.mxu0 0
    %202 = vmatpush1.bf16.msra.mxu0 0
    %203 = vmatprep.mubr.bf16.mxu0 0
    %204 = vmatmul.mubr.bf16.gmra.mrb[0].mxu0 %v128
    %v205 = vpop.f32.mrb[0].mxu0
    %v206 = vadd.f32 %v97, %v205
    %v207 = vpop.f32.mrb[0].mxu0
    %v208 = vadd.f32 %v101, %v207
    %v209 = vpop.f32.mrb[0].mxu0
    %v210 = vpop.f32.mrb[0].mxu0
    %211 = vdwg.mxu0
    %212 = vst [vmem:[#allocation2] sm:$0xff] %v165
    %213 = vst [vmem:[#allocation2 + $0x8] sm:$0xff] %v167
    %214 = vst [vmem:[#allocation2 + $0x10] sm:$0xff] %v206
    %215 = vst [vmem:[#allocation2 + $0x18] sm:$0xff] %v208
    %v216 = vld [vmem:[#allocation9] sm:$0xff]
    %v217 = vld [vmem:[#allocation9 + $0x8] sm:$0xff]
    %v218 = vld [vmem:[#allocation9 + $0x10] sm:$0xff]
    %v219 = vld [vmem:[#allocation9 + $0x18] sm:$0xff]
    %v220 = vld [vmem:[#allocation9 + $0x20] sm:$0xff]
    %v221 = vld [vmem:[#allocation9 + $0x28] sm:$0xff]
    %v222 = vld [vmem:[#allocation9 + $0x30] sm:$0xff]
    %v223 = vld [vmem:[#allocation9 + $0x38] sm:$0xff]
    %v224 = vld [vmem:[#allocation9 + $0x40] sm:$0xff]
    %v225 = vld [vmem:[#allocation9 + $0x48] sm:$0xff]
    %v226 = vld [vmem:[#allocation9 + $0x50] sm:$0xff]
    %v227 = vld [vmem:[#allocation9 + $0x58] sm:$0xff]
    %v228 = vld [vmem:[#allocation9 + $0x60] sm:$0xff]
    %v229 = vld [vmem:[#allocation9 + $0x68] sm:$0xff]
    %v230 = vld [vmem:[#allocation9 + $0x70] sm:$0xff]
    %v231 = vld [vmem:[#allocation9 + $0x78] sm:$0xff]
    %v232 = vld [vmem:[#allocation9 + $0x80] sm:$0xff]
    %v233 = vld [vmem:[#allocation9 + $0x88] sm:$0xff]
    %v234 = vld [vmem:[#allocation9 + $0x90] sm:$0xff]
    %v235 = vld [vmem:[#allocation9 + $0x98] sm:$0xff]
    %v236 = vld [vmem:[#allocation9 + $0xa0] sm:$0xff]
    %v237 = vld [vmem:[#allocation9 + $0xa8] sm:$0xff]
    %v238 = vld [vmem:[#allocation9 + $0xb0] sm:$0xff]
    %v239 = vld [vmem:[#allocation9 + $0xb8] sm:$0xff]
    %v240 = vld [vmem:[#allocation9 + $0xc0] sm:$0xff]
    %v241 = vld [vmem:[#allocation9 + $0xc8] sm:$0xff]
    %v242 = vld [vmem:[#allocation9 + $0xd0] sm:$0xff]
    %v243 = vld [vmem:[#allocation9 + $0xd8] sm:$0xff]
    %v244 = vld [vmem:[#allocation9 + $0xe0] sm:$0xff]
    %v245 = vld [vmem:[#allocation9 + $0xe8] sm:$0xff]
    %v246 = vld [vmem:[#allocation9 + $0xf0] sm:$0xff]
    %v247 = vld [vmem:[#allocation9 + $0xf8] sm:$0xff]
    %v248 = vld [vmem:[#allocation2] ss:$8 sm:$0xf]
    %v281 = vunpack.c.l.b16 %v216
    %v282 = vunpack.c.h.b16 %v216
    %v283 = vunpack.c.l.b16 %v217
    %v284 = vunpack.c.h.b16 %v217
    %v285 = vunpack.c.l.b16 %v218
    %v286 = vunpack.c.h.b16 %v218
    %v287 = vunpack.c.l.b16 %v219
    %v288 = vunpack.c.h.b16 %v219
    %v289 = vunpack.c.l.b16 %v220
    %v290 = vunpack.c.h.b16 %v220
    %v291 = vunpack.c.l.b16 %v221
    %v292 = vunpack.c.h.b16 %v221
    %v293 = vunpack.c.l.b16 %v222
    %v294 = vunpack.c.h.b16 %v222
    %v295 = vunpack.c.l.b16 %v223
    %v296 = vunpack.c.h.b16 %v223
    %v297 = vunpack.c.l.b16 %v224
    %v298 = vunpack.c.h.b16 %v224
    %v299 = vunpack.c.l.b16 %v225
    %v300 = vunpack.c.h.b16 %v225
    %v301 = vunpack.c.l.b16 %v226
    %v302 = vunpack.c.h.b16 %v226
    %v303 = vunpack.c.l.b16 %v227
    %v304 = vunpack.c.h.b16 %v227
    %v305 = vunpack.c.l.b16 %v228
    %v306 = vunpack.c.h.b16 %v228
    %v307 = vunpack.c.l.b16 %v229
    %v308 = vunpack.c.h.b16 %v229
    %v309 = vunpack.c.l.b16 %v230
    %v310 = vunpack.c.h.b16 %v230
    %v311 = vunpack.c.l.b16 %v231
    %v312 = vunpack.c.h.b16 %v231
    %v313 = vunpack.c.l.b16 %v232
    %v314 = vunpack.c.h.b16 %v232
    %v315 = vunpack.c.l.b16 %v233
    %v316 = vunpack.c.h.b16 %v233
    %v317 = vunpack.c.l.b16 %v234
    %v318 = vunpack.c.h.b16 %v234
    %v319 = vunpack.c.l.b16 %v235
    %v320 = vunpack.c.h.b16 %v235
    %v321 = vunpack.c.l.b16 %v236
    %v322 = vunpack.c.h.b16 %v236
    %v323 = vunpack.c.l.b16 %v237
    %v324 = vunpack.c.h.b16 %v237
    %v325 = vunpack.c.l.b16 %v238
    %v326 = vunpack.c.h.b16 %v238
    %v327 = vunpack.c.l.b16 %v239
    %v328 = vunpack.c.h.b16 %v239
    %v329 = vunpack.c.l.b16 %v240
    %v330 = vunpack.c.h.b16 %v240
    %v331 = vunpack.c.l.b16 %v241
    %v332 = vunpack.c.h.b16 %v241
    %v333 = vunpack.c.l.b16 %v242
    %v334 = vunpack.c.h.b16 %v242
    %v335 = vunpack.c.l.b16 %v243
    %v336 = vunpack.c.h.b16 %v243
    %v337 = vunpack.c.l.b16 %v244
    %v338 = vunpack.c.h.b16 %v244
    %v339 = vunpack.c.l.b16 %v245
    %v340 = vunpack.c.h.b16 %v245
    %v341 = vunpack.c.l.b16 %v246
    %v342 = vunpack.c.h.b16 %v246
    %v343 = vunpack.c.l.b16 %v247
    %v344 = vunpack.c.h.b16 %v247
    %v345 = vpack.c.b16 %v285, %v281
    %v346 = vpack.c.b16 %v286, %v282
    %v347 = vpack.c.b16 %v287, %v283
    %v348 = vpack.c.b16 %v288, %v284
    %v349 = vpack.c.b16 %v293, %v289
    %v350 = vpack.c.b16 %v294, %v290
    %v351 = vpack.c.b16 %v295, %v291
    %v352 = vpack.c.b16 %v296, %v292
    %v353 = vpack.c.b16 %v301, %v297
    %v354 = vpack.c.b16 %v302, %v298
    %v355 = vpack.c.b16 %v303, %v299
    %v356 = vpack.c.b16 %v304, %v300
    %v357 = vpack.c.b16 %v309, %v305
    %v358 = vpack.c.b16 %v310, %v306
    %v359 = vpack.c.b16 %v311, %v307
    %v360 = vpack.c.b16 %v312, %v308
    %v361 = vpack.c.b16 %v317, %v313
    %v362 = vpack.c.b16 %v318, %v314
    %v363 = vpack.c.b16 %v319, %v315
    %v364 = vpack.c.b16 %v320, %v316
    %v365 = vpack.c.b16 %v325, %v321
    %v366 = vpack.c.b16 %v326, %v322
    %v367 = vpack.c.b16 %v327, %v323
    %v368 = vpack.c.b16 %v328, %v324
    %v369 = vpack.c.b16 %v333, %v329
    %v370 = vpack.c.b16 %v334, %v330
    %v371 = vpack.c.b16 %v335, %v331
    %v372 = vpack.c.b16 %v336, %v332
    %v373 = vpack.c.b16 %v341, %v337
    %v374 = vpack.c.b16 %v342, %v338
    %v375 = vpack.c.b16 %v343, %v339
    %v376 = vpack.c.b16 %v344, %v340
    %409 = vmatprep.subr.bf16.mxu0 %v346
    %410 = vmatpush1.bf16.msra.mxu0 %v345
    %411 = vmatprep.subr.bf16.mxu0 %v350
    %412 = vmatpush1.bf16.msra.mxu0 %v349
    %413 = vmatprep.subr.bf16.mxu0 %v354
    %414 = vmatpush1.bf16.msra.mxu0 %v353
    %415 = vmatprep.subr.bf16.mxu0 %v358
    %416 = vmatpush1.bf16.msra.mxu0 %v357
    %417 = vmatprep.subr.bf16.mxu0 %v362
    %418 = vmatpush1.bf16.msra.mxu0 %v361
    %419 = vmatprep.subr.bf16.mxu0 %v366
    %420 = vmatpush1.bf16.msra.mxu0 %v365
    %421 = vmatprep.subr.bf16.mxu0 %v370
    %422 = vmatpush1.bf16.msra.mxu0 %v369
    %423 = vmatprep.subr.bf16.mxu0 %v374
    %424 = vmatpush1.bf16.msra.mxu0 %v373
    %425 = vmatprep.subr.bf16.mxu0 0
    %426 = vmatpush1.bf16.msra.mxu0 0
    %427 = vmatprep.subr.bf16.mxu0 0
    %428 = vmatpush1.bf16.msra.mxu0 0
    %429 = vmatprep.subr.bf16.mxu0 0
    %430 = vmatpush1.bf16.msra.mxu0 0
    %431 = vmatprep.subr.bf16.mxu0 0
    %432 = vmatpush1.bf16.msra.mxu0 0
    %433 = vmatprep.subr.bf16.mxu0 0
    %434 = vmatpush1.bf16.msra.mxu0 0
    %435 = vmatprep.subr.bf16.mxu0 0
    %436 = vmatpush1.bf16.msra.mxu0 0
    %437 = vmatprep.subr.bf16.mxu0 0
    %438 = vmatpush1.bf16.msra.mxu0 0
    %439 = vmatprep.subr.bf16.mxu0 0
    %440 = vmatpush1.bf16.msra.mxu0 0
    %441 = vmatprep.mubr.bf16.mxu0 0
    %442 = vmatmul.mubr.bf16.gmra.mrb[0].mxu0 0
    %v443 = vpop.f32.mrb[0].mxu0
    %v444 = vadd.f32 0.0, %v443
    %v445 = vpop.f32.mrb[0].mxu0
    %v446 = vadd.f32 0.0, %v445
    %v447 = vpop.f32.mrb[0].mxu0
    %v448 = vpop.f32.mrb[0].mxu0
    %449 = vdwg.mxu0
    %450 = vmatprep.subr.bf16.mxu0 %v348
    %451 = vmatpush1.bf16.msra.mxu0 %v347
    %452 = vmatprep.subr.bf16.mxu0 %v352
    %453 = vmatpush1.bf16.msra.mxu0 %v351
    %454 = vmatprep.subr.bf16.mxu0 %v356
    %455 = vmatpush1.bf16.msra.mxu0 %v355
    %456 = vmatprep.subr.bf16.mxu0 %v360
    %457 = vmatpush1.bf16.msra.mxu0 %v359
    %458 = vmatprep.subr.bf16.mxu0 %v364
    %459 = vmatpush1.bf16.msra.mxu0 %v363
    %460 = vmatprep.subr.bf16.mxu0 %v368
    %461 = vmatpush1.bf16.msra.mxu0 %v367
    %462 = vmatprep.subr.bf16.mxu0 %v372
    %463 = vmatpush1.bf16.msra.mxu0 %v371
    %464 = vmatprep.subr.bf16.mxu0 %v376
    %465 = vmatpush1.bf16.msra.mxu0 %v375
    %466 = vmatprep.subr.bf16.mxu0 0
    %467 = vmatpush1.bf16.msra.mxu0 0
    %468 = vmatprep.subr.bf16.mxu0 0
    %469 = vmatpush1.bf16.msra.mxu0 0
    %470 = vmatprep.subr.bf16.mxu0 0
    %471 = vmatpush1.bf16.msra.mxu0 0
    %472 = vmatprep.subr.bf16.mxu0 0
    %473 = vmatpush1.bf16.msra.mxu0 0
    %474 = vmatprep.subr.bf16.mxu0 0
    %475 = vmatpush1.bf16.msra.mxu0 0
    %476 = vmatprep.subr.bf16.mxu0 0
    %477 = vmatpush1.bf16.msra.mxu0 0
    %478 = vmatprep.subr.bf16.mxu0 0
    %479 = vmatpush1.bf16.msra.mxu0 0
    %480 = vmatprep.subr.bf16.mxu0 0
    %481 = vmatpush1.bf16.msra.mxu0 0
    %482 = vmatprep.mubr.bf16.mxu0 0
    %483 = vmatmul.mubr.bf16.gmra.mrb[0].mxu0 0
    %v484 = vpop.f32.mrb[0].mxu0
    %v485 = vadd.f32 0.0, %v484
    %v486 = vpop.f32.mrb[0].mxu0
    %v487 = vadd.f32 0.0, %v486
    %v488 = vpop.f32.mrb[0].mxu0
    %v489 = vpop.f32.mrb[0].mxu0
    %490 = vdwg.mxu0
    %v495 = vcombine.low %v444, %v446
    %v496 = vcombine.low %v485, %v487
    %v498 = vunpack.c.l.s4 1966171168
    %v499 = vunpack.c.0.s8 %v498
    %v500 = vlaneseq
    %v501 = vshrl.u32 %v500, 7
    %v502 = vsub.s32 %v499, %v501
    %v503 = vrot.slane %v495, %v502
    %v505 = vunpack.c.l.s4 1966171168
    %v506 = vunpack.c.0.s8 %v505
    %v507 = vlaneseq
    %v508 = vshrl.u32 %v507, 7
    %v509 = vsub.s32 %v506, %v508
    %v510 = vrot.slane %v496, %v509
    %v511 = vcombine.low %v503, %v510
    %v513 = vunpack.c.l.s4 1966171168
    %v514 = vunpack.c.0.s8 %v513
    %v515 = vlaneseq
    %v516 = vshrl.u32 %v515, 7
    %v517 = vsub.s32 %v514, %v516
    %v518 = vrot.slane %v511, %v517
    %v520 = vadd.f32 %v248, %v518
    %v521 = vxor.u32 %v520, 2147483648
    %v522 = vmul.f32 %v521, 1.442695
    %v523 = vpow.pop %v522
    %v524 = vadd.f32 %v523, 1.0
    %v525 = vrcp.pop %v524
    %v526 = vmul.f32 1.0, %v525
    %v528 = vrot.slane %v520, 1
    %v530 = vxor.u32 %v528, 2147483648
    %v531 = vmul.f32 %v530, 1.442695
    %v532 = vpow.pop %v531
    %v533 = vadd.f32 %v532, 1.0
    %v534 = vrcp.pop %v533
    %v535 = vmul.f32 1.0, %v534
    %v536 = vrot.slane %v520, 2
    %v538 = vtanh.pop %v536
    %v539 = vrot.slane %v520, 3
    %v541 = vxor.u32 %v539, 2147483648
    %v542 = vmul.f32 %v541, 1.442695
    %v543 = vpow.pop %v542
    %v544 = vadd.f32 %v543, 1.0
    %v545 = vrcp.pop %v544
    %v546 = vmul.f32 1.0, %v545
    %v547 = vmul.f32 %v535, 0.0
    %v548 = vmul.f32 %v526, %v538
    %v549 = vadd.f32 %v547, %v548
    %v550 = vtanh.pop %v549
    %v551 = vmul.f32 %v546, %v550
    %552 = vst [vmem:[#allocation3] sm:$0x1] %v551
    %s553 = scalar_lea.vmem [#allocation2], 1
    %v554 = vld [vmem:[%s553] ss:$8 sm:$0xf]
    %v555 = vpack.c.bf16 %v551, %v551
    %556 = vmatprep.subr.bf16.mxu0 %v346
    %557 = vmatpush1.bf16.msra.mxu0 %v345
    %558 = vmatprep.subr.bf16.mxu0 %v350
    %559 = vmatpush1.bf16.msra.mxu0 %v349
    %560 = vmatprep.subr.bf16.mxu0 %v354
    %561 = vmatpush1.bf16.msra.mxu0 %v353
    %562 = vmatprep.subr.bf16.mxu0 %v358
    %563 = vmatpush1.bf16.msra.mxu0 %v357
    %564 = vmatprep.subr.bf16.mxu0 %v362
    %565 = vmatpush1.bf16.msra.mxu0 %v361
    %566 = vmatprep.subr.bf16.mxu0 %v366
    %567 = vmatpush1.bf16.msra.mxu0 %v365
    %568 = vmatprep.subr.bf16.mxu0 %v370
    %569 = vmatpush1.bf16.msra.mxu0 %v369
    %570 = vmatprep.subr.bf16.mxu0 %v374
    %571 = vmatpush1.bf16.msra.mxu0 %v373
    %572 = vmatprep.subr.bf16.mxu0 0
    %573 = vmatpush1.bf16.msra.mxu0 0
    %574 = vmatprep.subr.bf16.mxu0 0
    %575 = vmatpush1.bf16.msra.mxu0 0
    %576 = vmatprep.subr.bf16.mxu0 0
    %577 = vmatpush1.bf16.msra.mxu0 0
    %578 = vmatprep.subr.bf16.mxu0 0
    %579 = vmatpush1.bf16.msra.mxu0 0
    %580 = vmatprep.subr.bf16.mxu0 0
    %581 = vmatpush1.bf16.msra.mxu0 0
    %582 = vmatprep.subr.bf16.mxu0 0
    %583 = vmatpush1.bf16.msra.mxu0 0
    %584 = vmatprep.subr.bf16.mxu0 0
    %585 = vmatpush1.bf16.msra.mxu0 0
    %586 = vmatprep.subr.bf16.mxu0 0
    %587 = vmatpush1.bf16.msra.mxu0 0
    %588 = vmatprep.mubr.bf16.mxu0 0
    %589 = vmatmul.mubr.bf16.gmra.mrb[0].mxu0 %v555
    %v590 = vpop.f32.mrb[0].mxu0
    %v591 = vadd.f32 0.0, %v590
    %v592 = vpop.f32.mrb[0].mxu0
    %v593 = vadd.f32 0.0, %v592
    %v594 = vpop.f32.mrb[0].mxu0
    %v595 = vpop.f32.mrb[0].mxu0
    %596 = vdwg.mxu0
    %597 = vmatprep.subr.bf16.mxu0 %v348
    %598 = vmatpush1.bf16.msra.mxu0 %v347
    %599 = vmatprep.subr.bf16.mxu0 %v352
    %600 = vmatpush1.bf16.msra.mxu0 %v351
    %601 = vmatprep.subr.bf16.mxu0 %v356
    %602 = vmatpush1.bf16.msra.mxu0 %v355
    %603 = vmatprep.subr.bf16.mxu0 %v360
    %604 = vmatpush1.bf16.msra.mxu0 %v359
    %605 = vmatprep.subr.bf16.mxu0 %v364
    %606 = vmatpush1.bf16.msra.mxu0 %v363
    %607 = vmatprep.subr.bf16.mxu0 %v368
    %608 = vmatpush1.bf16.msra.mxu0 %v367
    %609 = vmatprep.subr.bf16.mxu0 %v372
    %610 = vmatpush1.bf16.msra.mxu0 %v371
    %611 = vmatprep.subr.bf16.mxu0 %v376
    %612 = vmatpush1.bf16.msra.mxu0 %v375
    %613 = vmatprep.subr.bf16.mxu0 0
    %614 = vmatpush1.bf16.msra.mxu0 0
    %615 = vmatprep.subr.bf16.mxu0 0
    %616 = vmatpush1.bf16.msra.mxu0 0
    %617 = vmatprep.subr.bf16.mxu0 0
    %618 = vmatpush1.bf16.msra.mxu0 0
    %619 = vmatprep.subr.bf16.mxu0 0
    %620 = vmatpush1.bf16.msra.mxu0 0
    %621 = vmatprep.subr.bf16.mxu0 0
    %622 = vmatpush1.bf16.msra.mxu0 0
    %623 = vmatprep.subr.bf16.mxu0 0
    %624 = vmatpush1.bf16.msra.mxu0 0
    %625 = vmatprep.subr.bf16.mxu0 0
    %626 = vmatpush1.bf16.msra.mxu0 0
    %627 = vmatprep.subr.bf16.mxu0 0
    %628 = vmatpush1.bf16.msra.mxu0 0
    %629 = vmatprep.mubr.bf16.mxu0 0
    %630 = vmatmul.mubr.bf16.gmra.mrb[0].mxu0 %v555
    %v631 = vpop.f32.mrb[0].mxu0
    %v632 = vadd.f32 0.0, %v631
    %v633 = vpop.f32.mrb[0].mxu0
    %v634 = vadd.f32 0.0, %v633
    %v635 = vpop.f32.mrb[0].mxu0
    %v636 = vpop.f32.mrb[0].mxu0
    %637 = vdwg.mxu0
    %v642 = vcombine.low %v591, %v593
    %v643 = vcombine.low %v632, %v634
    %v645 = vunpack.c.l.s4 1966171168
    %v646 = vunpack.c.0.s8 %v645
    %v647 = vlaneseq
    %v648 = vshrl.u32 %v647, 7
    %v649 = vsub.s32 %v646, %v648
    %v650 = vrot.slane %v642, %v649
    %v652 = vunpack.c.l.s4 1966171168
    %v653 = vunpack.c.0.s8 %v652
    %v654 = vlaneseq
    %v655 = vshrl.u32 %v654, 7
    %v656 = vsub.s32 %v653, %v655
    %v657 = vrot.slane %v643, %v656
    %v658 = vcombine.low %v650, %v657
    %v660 = vunpack.c.l.s4 1966171168
    %v661 = vunpack.c.0.s8 %v660
    %v662 = vlaneseq
    %v663 = vshrl.u32 %v662, 7
    %v664 = vsub.s32 %v661, %v663
    %v665 = vrot.slane %v658, %v664
    %v667 = vadd.f32 %v554, %v665
    %v668 = vxor.u32 %v667, 2147483648
    %v669 = vmul.f32 %v668, 1.442695
    %v670 = vpow.pop %v669
    %v671 = vadd.f32 %v670, 1.0
    %v672 = vrcp.pop %v671
    %v673 = vmul.f32 1.0, %v672
    %v675 = vrot.slane %v667, 1
    %v677 = vxor.u32 %v675, 2147483648
    %v678 = vmul.f32 %v677, 1.442695
    %v679 = vpow.pop %v678
    %v680 = vadd.f32 %v679, 1.0
    %v681 = vrcp.pop %v680
    %v682 = vmul.f32 1.0, %v681
    %v683 = vrot.slane %v667, 2
    %v685 = vtanh.pop %v683
    %v686 = vrot.slane %v667, 3
    %v688 = vxor.u32 %v686, 2147483648
    %v689 = vmul.f32 %v688, 1.442695
    %v690 = vpow.pop %v689
    %v691 = vadd.f32 %v690, 1.0
    %v692 = vrcp.pop %v691
    %v693 = vmul.f32 1.0, %v692
    %v694 = vmul.f32 %v682, %v549
    %v695 = vmul.f32 %v673, %v685
    %v696 = vadd.f32 %v694, %v695
    %v697 = vtanh.pop %v696
    %v698 = vmul.f32 %v693, %v697
    %699 = vst [vmem:[#allocation3 + $0x1] sm:$0x1] %v698
    %s700 = scalar_lea.vmem [#allocation2], 2
    %v701 = vld [vmem:[%s700] ss:$8 sm:$0xf]
    %v702 = vpack.c.bf16 %v698, %v698
    %703 = vmatprep.subr.bf16.mxu0 %v346
    %704 = vmatpush1.bf16.msra.mxu0 %v345
    %705 = vmatprep.subr.bf16.mxu0 %v350
    %706 = vmatpush1.bf16.msra.mxu0 %v349
    %707 = vmatprep.subr.bf16.mxu0 %v354
    %708 = vmatpush1.bf16.msra.mxu0 %v353
    %709 = vmatprep.subr.bf16.mxu0 %v358
    %710 = vmatpush1.bf16.msra.mxu0 %v357
    %711 = vmatprep.subr.bf16.mxu0 %v362
    %712 = vmatpush1.bf16.msra.mxu0 %v361
    %713 = vmatprep.subr.bf16.mxu0 %v366
    %714 = vmatpush1.bf16.msra.mxu0 %v365
    %715 = vmatprep.subr.bf16.mxu0 %v370
    %716 = vmatpush1.bf16.msra.mxu0 %v369
    %717 = vmatprep.subr.bf16.mxu0 %v374
    %718 = vmatpush1.bf16.msra.mxu0 %v373
    %719 = vmatprep.subr.bf16.mxu0 0
    %720 = vmatpush1.bf16.msra.mxu0 0
    %721 = vmatprep.subr.bf16.mxu0 0
    %722 = vmatpush1.bf16.msra.mxu0 0
    %723 = vmatprep.subr.bf16.mxu0 0
    %724 = vmatpush1.bf16.msra.mxu0 0
    %725 = vmatprep.subr.bf16.mxu0 0
    %726 = vmatpush1.bf16.msra.mxu0 0
    %727 = vmatprep.subr.bf16.mxu0 0
    %728 = vmatpush1.bf16.msra.mxu0 0
    %729 = vmatprep.subr.bf16.mxu0 0
    %730 = vmatpush1.bf16.msra.mxu0 0
    %731 = vmatprep.subr.bf16.mxu0 0
    %732 = vmatpush1.bf16.msra.mxu0 0
    %733 = vmatprep.subr.bf16.mxu0 0
    %734 = vmatpush1.bf16.msra.mxu0 0
    %735 = vmatprep.mubr.bf16.mxu0 0
    %736 = vmatmul.mubr.bf16.gmra.mrb[0].mxu0 %v702
    %v737 = vpop.f32.mrb[0].mxu0
    %v738 = vadd.f32 0.0, %v737
    %v739 = vpop.f32.mrb[0].mxu0
    %v740 = vadd.f32 0.0, %v739
    %v741 = vpop.f32.mrb[0].mxu0
    %v742 = vpop.f32.mrb[0].mxu0
    %743 = vdwg.mxu0
    %744 = vmatprep.subr.bf16.mxu0 %v348
    %745 = vmatpush1.bf16.msra.mxu0 %v347
    %746 = vmatprep.subr.bf16.mxu0 %v352
    %747 = vmatpush1.bf16.msra.mxu0 %v351
    %748 = vmatprep.subr.bf16.mxu0 %v356
    %749 = vmatpush1.bf16.msra.mxu0 %v355
    %750 = vmatprep.subr.bf16.mxu0 %v360
    %751 = vmatpush1.bf16.msra.mxu0 %v359
    %752 = vmatprep.subr.bf16.mxu0 %v364
    %753 = vmatpush1.bf16.msra.mxu0 %v363
    %754 = vmatprep.subr.bf16.mxu0 %v368
    %755 = vmatpush1.bf16.msra.mxu0 %v367
    %756 = vmatprep.subr.bf16.mxu0 %v372
    %757 = vmatpush1.bf16.msra.mxu0 %v371
    %758 = vmatprep.subr.bf16.mxu0 %v376
    %759 = vmatpush1.bf16.msra.mxu0 %v375
    %760 = vmatprep.subr.bf16.mxu0 0
    %761 = vmatpush1.bf16.msra.mxu0 0
    %762 = vmatprep.subr.bf16.mxu0 0
    %763 = vmatpush1.bf16.msra.mxu0 0
    %764 = vmatprep.subr.bf16.mxu0 0
    %765 = vmatpush1.bf16.msra.mxu0 0
    %766 = vmatprep.subr.bf16.mxu0 0
    %767 = vmatpush1.bf16.msra.mxu0 0
    %768 = vmatprep.subr.bf16.mxu0 0
    %769 = vmatpush1.bf16.msra.mxu0 0
    %770 = vmatprep.subr.bf16.mxu0 0
    %771 = vmatpush1.bf16.msra.mxu0 0
    %772 = vmatprep.subr.bf16.mxu0 0
    %773 = vmatpush1.bf16.msra.mxu0 0
    %774 = vmatprep.subr.bf16.mxu0 0
    %775 = vmatpush1.bf16.msra.mxu0 0
    %776 = vmatprep.mubr.bf16.mxu0 0
    %777 = vmatmul.mubr.bf16.gmra.mrb[0].mxu0 %v702
    %v778 = vpop.f32.mrb[0].mxu0
    %v779 = vadd.f32 0.0, %v778
    %v780 = vpop.f32.mrb[0].mxu0
    %v781 = vadd.f32 0.0, %v780
    %v782 = vpop.f32.mrb[0].mxu0
    %v783 = vpop.f32.mrb[0].mxu0
    %784 = vdwg.mxu0
    %v789 = vcombine.low %v738, %v740
    %v790 = vcombine.low %v779, %v781
    %v792 = vunpack.c.l.s4 1966171168
    %v793 = vunpack.c.0.s8 %v792
    %v794 = vlaneseq
    %v795 = vshrl.u32 %v794, 7
    %v796 = vsub.s32 %v793, %v795
    %v797 = vrot.slane %v789, %v796
    %v799 = vunpack.c.l.s4 1966171168
    %v800 = vunpack.c.0.s8 %v799
    %v801 = vlaneseq
    %v802 = vshrl.u32 %v801, 7
    %v803 = vsub.s32 %v800, %v802
    %v804 = vrot.slane %v790, %v803
    %v805 = vcombine.low %v797, %v804
    %v807 = vunpack.c.l.s4 1966171168
    %v808 = vunpack.c.0.s8 %v807
    %v809 = vlaneseq
    %v810 = vshrl.u32 %v809, 7
    %v811 = vsub.s32 %v808, %v810
    %v812 = vrot.slane %v805, %v811
    %v814 = vadd.f32 %v701, %v812
    %v815 = vxor.u32 %v814, 2147483648
    %v816 = vmul.f32 %v815, 1.442695
    %v817 = vpow.pop %v816
    %v818 = vadd.f32 %v817, 1.0
    %v819 = vrcp.pop %v818
    %v820 = vmul.f32 1.0, %v819
    %v822 = vrot.slane %v814, 1
    %v824 = vxor.u32 %v822, 2147483648
    %v825 = vmul.f32 %v824, 1.442695
    %v826 = vpow.pop %v825
    %v827 = vadd.f32 %v826, 1.0
    %v828 = vrcp.pop %v827
    %v829 = vmul.f32 1.0, %v828
    %v830 = vrot.slane %v814, 2
    %v832 = vtanh.pop %v830
    %v833 = vrot.slane %v814, 3
    %v835 = vxor.u32 %v833, 2147483648
    %v836 = vmul.f32 %v835, 1.442695
    %v837 = vpow.pop %v836
    %v838 = vadd.f32 %v837, 1.0
    %v839 = vrcp.pop %v838
    %v840 = vmul.f32 1.0, %v839
    %v841 = vmul.f32 %v829, %v696
    %v842 = vmul.f32 %v820, %v832
    %v843 = vadd.f32 %v841, %v842
    %v844 = vtanh.pop %v843
    %v845 = vmul.f32 %v840, %v844
    %846 = vst [vmem:[#allocation3 + $0x2] sm:$0x1] %v845
    %s847 = scalar_lea.vmem [#allocation2], 3
    %v848 = vld [vmem:[%s847] ss:$8 sm:$0xf]
    %v849 = vpack.c.bf16 %v845, %v845
    %850 = vmatprep.subr.bf16.mxu0 %v346
    %851 = vmatpush1.bf16.msra.mxu0 %v345
    %852 = vmatprep.subr.bf16.mxu0 %v350
    %853 = vmatpush1.bf16.msra.mxu0 %v349
    %854 = vmatprep.subr.bf16.mxu0 %v354
    %855 = vmatpush1.bf16.msra.mxu0 %v353
    %856 = vmatprep.subr.bf16.mxu0 %v358
    %857 = vmatpush1.bf16.msra.mxu0 %v357
    %858 = vmatprep.subr.bf16.mxu0 %v362
    %859 = vmatpush1.bf16.msra.mxu0 %v361
    %860 = vmatprep.subr.bf16.mxu0 %v366
    %861 = vmatpush1.bf16.msra.mxu0 %v365
    %862 = vmatprep.subr.bf16.mxu0 %v370
    %863 = vmatpush1.bf16.msra.mxu0 %v369
    %864 = vmatprep.subr.bf16.mxu0 %v374
    %865 = vmatpush1.bf16.msra.mxu0 %v373
    %866 = vmatprep.subr.bf16.mxu0 0
    %867 = vmatpush1.bf16.msra.mxu0 0
    %868 = vmatprep.subr.bf16.mxu0 0
    %869 = vmatpush1.bf16.msra.mxu0 0
    %870 = vmatprep.subr.bf16.mxu0 0
    %871 = vmatpush1.bf16.msra.mxu0 0
    %872 = vmatprep.subr.bf16.mxu0 0
    %873 = vmatpush1.bf16.msra.mxu0 0
    %874 = vmatprep.subr.bf16.mxu0 0
    %875 = vmatpush1.bf16.msra.mxu0 0
    %876 = vmatprep.subr.bf16.mxu0 0
    %877 = vmatpush1.bf16.msra.mxu0 0
    %878 = vmatprep.subr.bf16.mxu0 0
    %879 = vmatpush1.bf16.msra.mxu0 0
    %880 = vmatprep.subr.bf16.mxu0 0
    %881 = vmatpush1.bf16.msra.mxu0 0
    %882 = vmatprep.mubr.bf16.mxu0 0
    %883 = vmatmul.mubr.bf16.gmra.mrb[0].mxu0 %v849
    %v884 = vpop.f32.mrb[0].mxu0
    %v885 = vadd.f32 0.0, %v884
    %v886 = vpop.f32.mrb[0].mxu0
    %v887 = vadd.f32 0.0, %v886
    %v888 = vpop.f32.mrb[0].mxu0
    %v889 = vpop.f32.mrb[0].mxu0
    %890 = vdwg.mxu0
    %891 = vmatprep.subr.bf16.mxu0 %v348
    %892 = vmatpush1.bf16.msra.mxu0 %v347
    %893 = vmatprep.subr.bf16.mxu0 %v352
    %894 = vmatpush1.bf16.msra.mxu0 %v351
    %895 = vmatprep.subr.bf16.mxu0 %v356
    %896 = vmatpush1.bf16.msra.mxu0 %v355
    %897 = vmatprep.subr.bf16.mxu0 %v360
    %898 = vmatpush1.bf16.msra.mxu0 %v359
    %899 = vmatprep.subr.bf16.mxu0 %v364
    %900 = vmatpush1.bf16.msra.mxu0 %v363
    %901 = vmatprep.subr.bf16.mxu0 %v368
    %902 = vmatpush1.bf16.msra.mxu0 %v367
    %903 = vmatprep.subr.bf16.mxu0 %v372
    %904 = vmatpush1.bf16.msra.mxu0 %v371
    %905 = vmatprep.subr.bf16.mxu0 %v376
    %906 = vmatpush1.bf16.msra.mxu0 %v375
    %907 = vmatprep.subr.bf16.mxu0 0
    %908 = vmatpush1.bf16.msra.mxu0 0
    %909 = vmatprep.subr.bf16.mxu0 0
    %910 = vmatpush1.bf16.msra.mxu0 0
    %911 = vmatprep.subr.bf16.mxu0 0
    %912 = vmatpush1.bf16.msra.mxu0 0
    %913 = vmatprep.subr.bf16.mxu0 0
    %914 = vmatpush1.bf16.msra.mxu0 0
    %915 = vmatprep.subr.bf16.mxu0 0
    %916 = vmatpush1.bf16.msra.mxu0 0
    %917 = vmatprep.subr.bf16.mxu0 0
    %918 = vmatpush1.bf16.msra.mxu0 0
    %919 = vmatprep.subr.bf16.mxu0 0
    %920 = vmatpush1.bf16.msra.mxu0 0
    %921 = vmatprep.subr.bf16.mxu0 0
    %922 = vmatpush1.bf16.msra.mxu0 0
    %923 = vmatprep.mubr.bf16.mxu0 0
    %924 = vmatmul.mubr.bf16.gmra.mrb[0].mxu0 %v849
    %v925 = vpop.f32.mrb[0].mxu0
    %v926 = vadd.f32 0.0, %v925
    %v927 = vpop.f32.mrb[0].mxu0
    %v928 = vadd.f32 0.0, %v927
    %v929 = vpop.f32.mrb[0].mxu0
    %v930 = vpop.f32.mrb[0].mxu0
    %931 = vdwg.mxu0
    %v936 = vcombine.low %v885, %v887
    %v937 = vcombine.low %v926, %v928
    %v939 = vunpack.c.l.s4 1966171168
    %v940 = vunpack.c.0.s8 %v939
    %v941 = vlaneseq
    %v942 = vshrl.u32 %v941, 7
    %v943 = vsub.s32 %v940, %v942
    %v944 = vrot.slane %v936, %v943
    %v946 = vunpack.c.l.s4 1966171168
    %v947 = vunpack.c.0.s8 %v946
    %v948 = vlaneseq
    %v949 = vshrl.u32 %v948, 7
    %v950 = vsub.s32 %v947, %v949
    %v951 = vrot.slane %v937, %v950
    %v952 = vcombine.low %v944, %v951
    %v954 = vunpack.c.l.s4 1966171168
    %v955 = vunpack.c.0.s8 %v954
    %v956 = vlaneseq
    %v957 = vshrl.u32 %v956, 7
    %v958 = vsub.s32 %v955, %v957
    %v959 = vrot.slane %v952, %v958
    %v961 = vadd.f32 %v848, %v959
    %v962 = vxor.u32 %v961, 2147483648
    %v963 = vmul.f32 %v962, 1.442695
    %v964 = vpow.pop %v963
    %v965 = vadd.f32 %v964, 1.0
    %v966 = vrcp.pop %v965
    %v967 = vmul.f32 1.0, %v966
    %v969 = vrot.slane %v961, 1
    %v971 = vxor.u32 %v969, 2147483648
    %v972 = vmul.f32 %v971, 1.442695
    %v973 = vpow.pop %v972
    %v974 = vadd.f32 %v973, 1.0
    %v975 = vrcp.pop %v974
    %v976 = vmul.f32 1.0, %v975
    %v977 = vrot.slane %v961, 2
    %v979 = vtanh.pop %v977
    %v980 = vrot.slane %v961, 3
    %v982 = vxor.u32 %v980, 2147483648
    %v983 = vmul.f32 %v982, 1.442695
    %v984 = vpow.pop %v983
    %v985 = vadd.f32 %v984, 1.0
    %v986 = vrcp.pop %v985
    %v987 = vmul.f32 1.0, %v986
    %v988 = vmul.f32 %v976, %v843
    %v989 = vmul.f32 %v967, %v979
    %v990 = vadd.f32 %v988, %v989
    %v991 = vtanh.pop %v990
    %v992 = vmul.f32 %v987, %v991
    %993 = vst [vmem:[#allocation3 + $0x3] sm:$0x1] %v992
    %s994 = scalar_lea.vmem [#allocation2], 4
    %v995 = vld [vmem:[%s994] ss:$8 sm:$0xf]
    %v996 = vpack.c.bf16 %v992, %v992
    %997 = vmatprep.subr.bf16.mxu0 %v346
    %998 = vmatpush1.bf16.msra.mxu0 %v345
    %999 = vmatprep.subr.bf16.mxu0 %v350
    %1000 = vmatpush1.bf16.msra.mxu0 %v349
    %1001 = vmatprep.subr.bf16.mxu0 %v354
    %1002 = vmatpush1.bf16.msra.mxu0 %v353
    %1003 = vmatprep.subr.bf16.mxu0 %v358
    %1004 = vmatpush1.bf16.msra.mxu0 %v357
    %1005 = vmatprep.subr.bf16.mxu0 %v362
    %1006 = vmatpush1.bf16.msra.mxu0 %v361
    %1007 = vmatprep.subr.bf16.mxu0 %v366
    %1008 = vmatpush1.bf16.msra.mxu0 %v365
    %1009 = vmatprep.subr.bf16.mxu0 %v370
    %1010 = vmatpush1.bf16.msra.mxu0 %v369
    %1011 = vmatprep.subr.bf16.mxu0 %v374
    %1012 = vmatpush1.bf16.msra.mxu0 %v373
    %1013 = vmatprep.subr.bf16.mxu0 0
    %1014 = vmatpush1.bf16.msra.mxu0 0
    %1015 = vmatprep.subr.bf16.mxu0 0
    %1016 = vmatpush1.bf16.msra.mxu0 0
    %1017 = vmatprep.subr.bf16.mxu0 0
    %1018 = vmatpush1.bf16.msra.mxu0 0
    %1019 = vmatprep.subr.bf16.mxu0 0
    %1020 = vmatpush1.bf16.msra.mxu0 0
    %1021 = vmatprep.subr.bf16.mxu0 0
    %1022 = vmatpush1.bf16.msra.mxu0 0
    %1023 = vmatprep.subr.bf16.mxu0 0
    %1024 = vmatpush1.bf16.msra.mxu0 0
    %1025 = vmatprep.subr.bf16.mxu0 0
    %1026 = vmatpush1.bf16.msra.mxu0 0
    %1027 = vmatprep.subr.bf16.mxu0 0
    %1028 = vmatpush1.bf16.msra.mxu0 0
    %1029 = vmatprep.mubr.bf16.mxu0 0
    %1030 = vmatmul.mubr.bf16.gmra.mrb[0].mxu0 %v996
    %v1031 = vpop.f32.mrb[0].mxu0
    %v1032 = vadd.f32 0.0, %v1031
    %v1033 = vpop.f32.mrb[0].mxu0
    %v1034 = vadd.f32 0.0, %v1033
    %v1035 = vpop.f32.mrb[0].mxu0
    %v1036 = vpop.f32.mrb[0].mxu0
    %1037 = vdwg.mxu0
    %1038 = vmatprep.subr.bf16.mxu0 %v348
    %1039 = vmatpush1.bf16.msra.mxu0 %v347
    %1040 = vmatprep.subr.bf16.mxu0 %v352
    %1041 = vmatpush1.bf16.msra.mxu0 %v351
    %1042 = vmatprep.subr.bf16.mxu0 %v356
    %1043 = vmatpush1.bf16.msra.mxu0 %v355
    %1044 = vmatprep.subr.bf16.mxu0 %v360
    %1045 = vmatpush1.bf16.msra.mxu0 %v359
    %1046 = vmatprep.subr.bf16.mxu0 %v364
    %1047 = vmatpush1.bf16.msra.mxu0 %v363
    %1048 = vmatprep.subr.bf16.mxu0 %v368
    %1049 = vmatpush1.bf16.msra.mxu0 %v367
    %1050 = vmatprep.subr.bf16.mxu0 %v372
    %1051 = vmatpush1.bf16.msra.mxu0 %v371
    %1052 = vmatprep.subr.bf16.mxu0 %v376
    %1053 = vmatpush1.bf16.msra.mxu0 %v375
    %1054 = vmatprep.subr.bf16.mxu0 0
    %1055 = vmatpush1.bf16.msra.mxu0 0
    %1056 = vmatprep.subr.bf16.mxu0 0
    %1057 = vmatpush1.bf16.msra.mxu0 0
    %1058 = vmatprep.subr.bf16.mxu0 0
    %1059 = vmatpush1.bf16.msra.mxu0 0
    %1060 = vmatprep.subr.bf16.mxu0 0
    %1061 = vmatpush1.bf16.msra.mxu0 0
    %1062 = vmatprep.subr.bf16.mxu0 0
    %1063 = vmatpush1.bf16.msra.mxu0 0
    %1064 = vmatprep.subr.bf16.mxu0 0
    %1065 = vmatpush1.bf16.msra.mxu0 0
    %1066 = vmatprep.subr.bf16.mxu0 0
    %1067 = vmatpush1.bf16.msra.mxu0 0
    %1068 = vmatprep.subr.bf16.mxu0 0
    %1069 = vmatpush1.bf16.msra.mxu0 0
    %1070 = vmatprep.mubr.bf16.mxu0 0
    %1071 = vmatmul.mubr.bf16.gmra.mrb[0].mxu0 %v996
    %v1072 = vpop.f32.mrb[0].mxu0
    %v1073 = vadd.f32 0.0, %v1072
    %v1074 = vpop.f32.mrb[0].mxu0
    %v1075 = vadd.f32 0.0, %v1074
    %v1076 = vpop.f32.mrb[0].mxu0
    %v1077 = vpop.f32.mrb[0].mxu0
    %1078 = vdwg.mxu0
    %v1083 = vcombine.low %v1032, %v1034
    %v1084 = vcombine.low %v1073, %v1075
    %v1086 = vunpack.c.l.s4 1966171168
    %v1087 = vunpack.c.0.s8 %v1086
    %v1088 = vlaneseq
    %v1089 = vshrl.u32 %v1088, 7
    %v1090 = vsub.s32 %v1087, %v1089
    %v1091 = vrot.slane %v1083, %v1090
    %v1093 = vunpack.c.l.s4 1966171168
    %v1094 = vunpack.c.0.s8 %v1093
    %v1095 = vlaneseq
    %v1096 = vshrl.u32 %v1095, 7
    %v1097 = vsub.s32 %v1094, %v1096
    %v1098 = vrot.slane %v1084, %v1097
    %v1099 = vcombine.low %v1091, %v1098
    %v1101 = vunpack.c.l.s4 1966171168
    %v1102 = vunpack.c.0.s8 %v1101
    %v1103 = vlaneseq
    %v1104 = vshrl.u32 %v1103, 7
    %v1105 = vsub.s32 %v1102, %v1104
    %v1106 = vrot.slane %v1099, %v1105
    %v1108 = vadd.f32 %v995, %v1106
    %v1109 = vxor.u32 %v1108, 2147483648
    %v1110 = vmul.f32 %v1109, 1.442695
    %v1111 = vpow.pop %v1110
    %v1112 = vadd.f32 %v1111, 1.0
    %v1113 = vrcp.pop %v1112
    %v1114 = vmul.f32 1.0, %v1113
    %v1116 = vrot.slane %v1108, 1
    %v1118 = vxor.u32 %v1116, 2147483648
    %v1119 = vmul.f32 %v1118, 1.442695
    %v1120 = vpow.pop %v1119
    %v1121 = vadd.f32 %v1120, 1.0
    %v1122 = vrcp.pop %v1121
    %v1123 = vmul.f32 1.0, %v1122
    %v1124 = vrot.slane %v1108, 2
    %v1126 = vtanh.pop %v1124
    %v1127 = vrot.slane %v1108, 3
    %v1129 = vxor.u32 %v1127, 2147483648
    %v1130 = vmul.f32 %v1129, 1.442695
    %v1131 = vpow.pop %v1130
    %v1132 = vadd.f32 %v1131, 1.0
    %v1133 = vrcp.pop %v1132
    %v1134 = vmul.f32 1.0, %v1133
    %v1135 = vmul.f32 %v1123, %v990
    %v1136 = vmul.f32 %v1114, %v1126
    %v1137 = vadd.f32 %v1135, %v1136
    %v1138 = vtanh.pop %v1137
    %v1139 = vmul.f32 %v1134, %v1138
    %1140 = vst [vmem:[#allocation3 + $0x4] sm:$0x1] %v1139
    %s1141 = scalar_lea.vmem [#allocation2], 5
    %v1142 = vld [vmem:[%s1141] ss:$8 sm:$0xf]
    %v1143 = vpack.c.bf16 %v1139, %v1139
    %1144 = vmatprep.subr.bf16.mxu0 %v346
    %1145 = vmatpush1.bf16.msra.mxu0 %v345
    %1146 = vmatprep.subr.bf16.mxu0 %v350
    %1147 = vmatpush1.bf16.msra.mxu0 %v349
    %1148 = vmatprep.subr.bf16.mxu0 %v354
    %1149 = vmatpush1.bf16.msra.mxu0 %v353
    %1150 = vmatprep.subr.bf16.mxu0 %v358
    %1151 = vmatpush1.bf16.msra.mxu0 %v357
    %1152 = vmatprep.subr.bf16.mxu0 %v362
    %1153 = vmatpush1.bf16.msra.mxu0 %v361
    %1154 = vmatprep.subr.bf16.mxu0 %v366
    %1155 = vmatpush1.bf16.msra.mxu0 %v365
    %1156 = vmatprep.subr.bf16.mxu0 %v370
    %1157 = vmatpush1.bf16.msra.mxu0 %v369
    %1158 = vmatprep.subr.bf16.mxu0 %v374
    %1159 = vmatpush1.bf16.msra.mxu0 %v373
    %1160 = vmatprep.subr.bf16.mxu0 0
    %1161 = vmatpush1.bf16.msra.mxu0 0
    %1162 = vmatprep.subr.bf16.mxu0 0
    %1163 = vmatpush1.bf16.msra.mxu0 0
    %1164 = vmatprep.subr.bf16.mxu0 0
    %1165 = vmatpush1.bf16.msra.mxu0 0
    %1166 = vmatprep.subr.bf16.mxu0 0
    %1167 = vmatpush1.bf16.msra.mxu0 0
    %1168 = vmatprep.subr.bf16.mxu0 0
    %1169 = vmatpush1.bf16.msra.mxu0 0
    %1170 = vmatprep.subr.bf16.mxu0 0
    %1171 = vmatpush1.bf16.msra.mxu0 0
    %1172 = vmatprep.subr.bf16.mxu0 0
    %1173 = vmatpush1.bf16.msra.mxu0 0
    %1174 = vmatprep.subr.bf16.mxu0 0
    %1175 = vmatpush1.bf16.msra.mxu0 0
    %1176 = vmatprep.mubr.bf16.mxu0 0
    %1177 = vmatmul.mubr.bf16.gmra.mrb[0].mxu0 %v1143
    %v1178 = vpop.f32.mrb[0].mxu0
    %v1179 = vadd.f32 0.0, %v1178
    %v1180 = vpop.f32.mrb[0].mxu0
    %v1181 = vadd.f32 0.0, %v1180
    %v1182 = vpop.f32.mrb[0].mxu0
    %v1183 = vpop.f32.mrb[0].mxu0
    %1184 = vdwg.mxu0
    %1185 = vmatprep.subr.bf16.mxu0 %v348
    %1186 = vmatpush1.bf16.msra.mxu0 %v347
    %1187 = vmatprep.subr.bf16.mxu0 %v352
    %1188 = vmatpush1.bf16.msra.mxu0 %v351
    %1189 = vmatprep.subr.bf16.mxu0 %v356
    %1190 = vmatpush1.bf16.msra.mxu0 %v355
    %1191 = vmatprep.subr.bf16.mxu0 %v360
    %1192 = vmatpush1.bf16.msra.mxu0 %v359
    %1193 = vmatprep.subr.bf16.mxu0 %v364
    %1194 = vmatpush1.bf16.msra.mxu0 %v363
    %1195 = vmatprep.subr.bf16.mxu0 %v368
    %1196 = vmatpush1.bf16.msra.mxu0 %v367
    %1197 = vmatprep.subr.bf16.mxu0 %v372
    %1198 = vmatpush1.bf16.msra.mxu0 %v371
    %1199 = vmatprep.subr.bf16.mxu0 %v376
    %1200 = vmatpush1.bf16.msra.mxu0 %v375
    %1201 = vmatprep.subr.bf16.mxu0 0
    %1202 = vmatpush1.bf16.msra.mxu0 0
    %1203 = vmatprep.subr.bf16.mxu0 0
    %1204 = vmatpush1.bf16.msra.mxu0 0
    %1205 = vmatprep.subr.bf16.mxu0 0
    %1206 = vmatpush1.bf16.msra.mxu0 0
    %1207 = vmatprep.subr.bf16.mxu0 0
    %1208 = vmatpush1.bf16.msra.mxu0 0
    %1209 = vmatprep.subr.bf16.mxu0 0
    %1210 = vmatpush1.bf16.msra.mxu0 0
    %1211 = vmatprep.subr.bf16.mxu0 0
    %1212 = vmatpush1.bf16.msra.mxu0 0
    %1213 = vmatprep.subr.bf16.mxu0 0
    %1214 = vmatpush1.bf16.msra.mxu0 0
    %1215 = vmatprep.subr.bf16.mxu0 0
    %1216 = vmatpush1.bf16.msra.mxu0 0
    %1217 = vmatprep.mubr.bf16.mxu0 0
    %1218 = vmatmul.mubr.bf16.gmra.mrb[0].mxu0 %v1143
    %v1219 = vpop.f32.mrb[0].mxu0
    %v1220 = vadd.f32 0.0, %v1219
    %v1221 = vpop.f32.mrb[0].mxu0
    %v1222 = vadd.f32 0.0, %v1221
    %v1223 = vpop.f32.mrb[0].mxu0
    %v1224 = vpop.f32.mrb[0].mxu0
    %1225 = vdwg.mxu0
    %v1230 = vcombine.low %v1179, %v1181
    %v1231 = vcombine.low %v1220, %v1222
    %v1233 = vunpack.c.l.s4 1966171168
    %v1234 = vunpack.c.0.s8 %v1233
    %v1235 = vlaneseq
    %v1236 = vshrl.u32 %v1235, 7
    %v1237 = vsub.s32 %v1234, %v1236
    %v1238 = vrot.slane %v1230, %v1237
    %v1240 = vunpack.c.l.s4 1966171168
    %v1241 = vunpack.c.0.s8 %v1240
    %v1242 = vlaneseq
    %v1243 = vshrl.u32 %v1242, 7
    %v1244 = vsub.s32 %v1241, %v1243
    %v1245 = vrot.slane %v1231, %v1244
    %v1246 = vcombine.low %v1238, %v1245
    %v1248 = vunpack.c.l.s4 1966171168
    %v1249 = vunpack.c.0.s8 %v1248
    %v1250 = vlaneseq
    %v1251 = vshrl.u32 %v1250, 7
    %v1252 = vsub.s32 %v1249, %v1251
    %v1253 = vrot.slane %v1246, %v1252
    %v1255 = vadd.f32 %v1142, %v1253
    %v1256 = vxor.u32 %v1255, 2147483648
    %v1257 = vmul.f32 %v1256, 1.442695
    %v1258 = vpow.pop %v1257
    %v1259 = vadd.f32 %v1258, 1.0
    %v1260 = vrcp.pop %v1259
    %v1261 = vmul.f32 1.0, %v1260
    %v1263 = vrot.slane %v1255, 1
    %v1265 = vxor.u32 %v1263, 2147483648
    %v1266 = vmul.f32 %v1265, 1.442695
    %v1267 = vpow.pop %v1266
    %v1268 = vadd.f32 %v1267, 1.0
    %v1269 = vrcp.pop %v1268
    %v1270 = vmul.f32 1.0, %v1269
    %v1271 = vrot.slane %v1255, 2
    %v1273 = vtanh.pop %v1271
    %v1274 = vrot.slane %v1255, 3
    %v1276 = vxor.u32 %v1274, 2147483648
    %v1277 = vmul.f32 %v1276, 1.442695
    %v1278 = vpow.pop %v1277
    %v1279 = vadd.f32 %v1278, 1.0
    %v1280 = vrcp.pop %v1279
    %v1281 = vmul.f32 1.0, %v1280
    %v1282 = vmul.f32 %v1270, %v1137
    %v1283 = vmul.f32 %v1261, %v1273
    %v1284 = vadd.f32 %v1282, %v1283
    %v1285 = vtanh.pop %v1284
    %v1286 = vmul.f32 %v1281, %v1285
    %1287 = vst [vmem:[#allocation3 + $0x5] sm:$0x1] %v1286
    %s1288 = scalar_lea.vmem [#allocation2], 6
    %v1289 = vld [vmem:[%s1288] ss:$8 sm:$0xf]
    %v1290 = vpack.c.bf16 %v1286, %v1286
    %1291 = vmatprep.subr.bf16.mxu0 %v346
    %1292 = vmatpush1.bf16.msra.mxu0 %v345
    %1293 = vmatprep.subr.bf16.mxu0 %v350
    %1294 = vmatpush1.bf16.msra.mxu0 %v349
    %1295 = vmatprep.subr.bf16.mxu0 %v354
    %1296 = vmatpush1.bf16.msra.mxu0 %v353
    %1297 = vmatprep.subr.bf16.mxu0 %v358
    %1298 = vmatpush1.bf16.msra.mxu0 %v357
    %1299 = vmatprep.subr.bf16.mxu0 %v362
    %1300 = vmatpush1.bf16.msra.mxu0 %v361
    %1301 = vmatprep.subr.bf16.mxu0 %v366
    %1302 = vmatpush1.bf16.msra.mxu0 %v365
    %1303 = vmatprep.subr.bf16.mxu0 %v370
    %1304 = vmatpush1.bf16.msra.mxu0 %v369
    %1305 = vmatprep.subr.bf16.mxu0 %v374
    %1306 = vmatpush1.bf16.msra.mxu0 %v373
    %1307 = vmatprep.subr.bf16.mxu0 0
    %1308 = vmatpush1.bf16.msra.mxu0 0
    %1309 = vmatprep.subr.bf16.mxu0 0
    %1310 = vmatpush1.bf16.msra.mxu0 0
    %1311 = vmatprep.subr.bf16.mxu0 0
    %1312 = vmatpush1.bf16.msra.mxu0 0
    %1313 = vmatprep.subr.bf16.mxu0 0
    %1314 = vmatpush1.bf16.msra.mxu0 0
    %1315 = vmatprep.subr.bf16.mxu0 0
    %1316 = vmatpush1.bf16.msra.mxu0 0
    %1317 = vmatprep.subr.bf16.mxu0 0
    %1318 = vmatpush1.bf16.msra.mxu0 0
    %1319 = vmatprep.subr.bf16.mxu0 0
    %1320 = vmatpush1.bf16.msra.mxu0 0
    %1321 = vmatprep.subr.bf16.mxu0 0
    %1322 = vmatpush1.bf16.msra.mxu0 0
    %1323 = vmatprep.mubr.bf16.mxu0 0
    %1324 = vmatmul.mubr.bf16.gmra.mrb[0].mxu0 %v1290
    %v1325 = vpop.f32.mrb[0].mxu0
    %v1326 = vadd.f32 0.0, %v1325
    %v1327 = vpop.f32.mrb[0].mxu0
    %v1328 = vadd.f32 0.0, %v1327
    %v1329 = vpop.f32.mrb[0].mxu0
    %v1330 = vpop.f32.mrb[0].mxu0
    %1331 = vdwg.mxu0
    %1332 = vmatprep.subr.bf16.mxu0 %v348
    %1333 = vmatpush1.bf16.msra.mxu0 %v347
    %1334 = vmatprep.subr.bf16.mxu0 %v352
    %1335 = vmatpush1.bf16.msra.mxu0 %v351
    %1336 = vmatprep.subr.bf16.mxu0 %v356
    %1337 = vmatpush1.bf16.msra.mxu0 %v355
    %1338 = vmatprep.subr.bf16.mxu0 %v360
    %1339 = vmatpush1.bf16.msra.mxu0 %v359
    %1340 = vmatprep.subr.bf16.mxu0 %v364
    %1341 = vmatpush1.bf16.msra.mxu0 %v363
    %1342 = vmatprep.subr.bf16.mxu0 %v368
    %1343 = vmatpush1.bf16.msra.mxu0 %v367
    %1344 = vmatprep.subr.bf16.mxu0 %v372
    %1345 = vmatpush1.bf16.msra.mxu0 %v371
    %1346 = vmatprep.subr.bf16.mxu0 %v376
    %1347 = vmatpush1.bf16.msra.mxu0 %v375
    %1348 = vmatprep.subr.bf16.mxu0 0
    %1349 = vmatpush1.bf16.msra.mxu0 0
    %1350 = vmatprep.subr.bf16.mxu0 0
    %1351 = vmatpush1.bf16.msra.mxu0 0
    %1352 = vmatprep.subr.bf16.mxu0 0
    %1353 = vmatpush1.bf16.msra.mxu0 0
    %1354 = vmatprep.subr.bf16.mxu0 0
    %1355 = vmatpush1.bf16.msra.mxu0 0
    %1356 = vmatprep.subr.bf16.mxu0 0
    %1357 = vmatpush1.bf16.msra.mxu0 0
    %1358 = vmatprep.subr.bf16.mxu0 0
    %1359 = vmatpush1.bf16.msra.mxu0 0
    %1360 = vmatprep.subr.bf16.mxu0 0
    %1361 = vmatpush1.bf16.msra.mxu0 0
    %1362 = vmatprep.subr.bf16.mxu0 0
    %1363 = vmatpush1.bf16.msra.mxu0 0
    %1364 = vmatprep.mubr.bf16.mxu0 0
    %1365 = vmatmul.mubr.bf16.gmra.mrb[0].mxu0 %v1290
    %v1366 = vpop.f32.mrb[0].mxu0
    %v1367 = vadd.f32 0.0, %v1366
    %v1368 = vpop.f32.mrb[0].mxu0
    %v1369 = vadd.f32 0.0, %v1368
    %v1370 = vpop.f32.mrb[0].mxu0
    %v1371 = vpop.f32.mrb[0].mxu0
    %1372 = vdwg.mxu0
    %v1377 = vcombine.low %v1326, %v1328
    %v1378 = vcombine.low %v1367, %v1369
    %v1380 = vunpack.c.l.s4 1966171168
    %v1381 = vunpack.c.0.s8 %v1380
    %v1382 = vlaneseq
    %v1383 = vshrl.u32 %v1382, 7
    %v1384 = vsub.s32 %v1381, %v1383
    %v1385 = vrot.slane %v1377, %v1384
    %v1387 = vunpack.c.l.s4 1966171168
    %v1388 = vunpack.c.0.s8 %v1387
    %v1389 = vlaneseq
    %v1390 = vshrl.u32 %v1389, 7
    %v1391 = vsub.s32 %v1388, %v1390
    %v1392 = vrot.slane %v1378, %v1391
    %v1393 = vcombine.low %v1385, %v1392
    %v1395 = vunpack.c.l.s4 1966171168
    %v1396 = vunpack.c.0.s8 %v1395
    %v1397 = vlaneseq
    %v1398 = vshrl.u32 %v1397, 7
    %v1399 = vsub.s32 %v1396, %v1398
    %v1400 = vrot.slane %v1393, %v1399
    %v1402 = vadd.f32 %v1289, %v1400
    %v1403 = vxor.u32 %v1402, 2147483648
    %v1404 = vmul.f32 %v1403, 1.442695
    %v1405 = vpow.pop %v1404
    %v1406 = vadd.f32 %v1405, 1.0
    %v1407 = vrcp.pop %v1406
    %v1408 = vmul.f32 1.0, %v1407
    %v1410 = vrot.slane %v1402, 1
    %v1412 = vxor.u32 %v1410, 2147483648
    %v1413 = vmul.f32 %v1412, 1.442695
    %v1414 = vpow.pop %v1413
    %v1415 = vadd.f32 %v1414, 1.0
    %v1416 = vrcp.pop %v1415
    %v1417 = vmul.f32 1.0, %v1416
    %v1418 = vrot.slane %v1402, 2
    %v1420 = vtanh.pop %v1418
    %v1421 = vrot.slane %v1402, 3
    %v1423 = vxor.u32 %v1421, 2147483648
    %v1424 = vmul.f32 %v1423, 1.442695
    %v1425 = vpow.pop %v1424
    %v1426 = vadd.f32 %v1425, 1.0
    %v1427 = vrcp.pop %v1426
    %v1428 = vmul.f32 1.0, %v1427
    %v1429 = vmul.f32 %v1417, %v1284
    %v1430 = vmul.f32 %v1408, %v1420
    %v1431 = vadd.f32 %v1429, %v1430
    %v1432 = vtanh.pop %v1431
    %v1433 = vmul.f32 %v1428, %v1432
    %1434 = vst [vmem:[#allocation3 + $0x6] sm:$0x1] %v1433
    %s1435 = scalar_lea.vmem [#allocation2], 7
    %v1436 = vld [vmem:[%s1435] ss:$8 sm:$0xf]
    %v1437 = vpack.c.bf16 %v1433, %v1433
    %1438 = vmatprep.subr.bf16.mxu0 %v346
    %1439 = vmatpush1.bf16.msra.mxu0 %v345
    %1440 = vmatprep.subr.bf16.mxu0 %v350
    %1441 = vmatpush1.bf16.msra.mxu0 %v349
    %1442 = vmatprep.subr.bf16.mxu0 %v354
    %1443 = vmatpush1.bf16.msra.mxu0 %v353
    %1444 = vmatprep.subr.bf16.mxu0 %v358
    %1445 = vmatpush1.bf16.msra.mxu0 %v357
    %1446 = vmatprep.subr.bf16.mxu0 %v362
    %1447 = vmatpush1.bf16.msra.mxu0 %v361
    %1448 = vmatprep.subr.bf16.mxu0 %v366
    %1449 = vmatpush1.bf16.msra.mxu0 %v365
    %1450 = vmatprep.subr.bf16.mxu0 %v370
    %1451 = vmatpush1.bf16.msra.mxu0 %v369
    %1452 = vmatprep.subr.bf16.mxu0 %v374
    %1453 = vmatpush1.bf16.msra.mxu0 %v373
    %1454 = vmatprep.subr.bf16.mxu0 0
    %1455 = vmatpush1.bf16.msra.mxu0 0
    %1456 = vmatprep.subr.bf16.mxu0 0
    %1457 = vmatpush1.bf16.msra.mxu0 0
    %1458 = vmatprep.subr.bf16.mxu0 0
    %1459 = vmatpush1.bf16.msra.mxu0 0
    %1460 = vmatprep.subr.bf16.mxu0 0
    %1461 = vmatpush1.bf16.msra.mxu0 0
    %1462 = vmatprep.subr.bf16.mxu0 0
    %1463 = vmatpush1.bf16.msra.mxu0 0
    %1464 = vmatprep.subr.bf16.mxu0 0
    %1465 = vmatpush1.bf16.msra.mxu0 0
    %1466 = vmatprep.subr.bf16.mxu0 0
    %1467 = vmatpush1.bf16.msra.mxu0 0
    %1468 = vmatprep.subr.bf16.mxu0 0
    %1469 = vmatpush1.bf16.msra.mxu0 0
    %1470 = vmatprep.mubr.bf16.mxu0 0
    %1471 = vmatmul.mubr.bf16.gmra.mrb[0].mxu0 %v1437
    %v1472 = vpop.f32.mrb[0].mxu0
    %v1473 = vadd.f32 0.0, %v1472
    %v1474 = vpop.f32.mrb[0].mxu0
    %v1475 = vadd.f32 0.0, %v1474
    %v1476 = vpop.f32.mrb[0].mxu0
    %v1477 = vpop.f32.mrb[0].mxu0
    %1478 = vdwg.mxu0
    %1479 = vmatprep.subr.bf16.mxu0 %v348
    %1480 = vmatpush1.bf16.msra.mxu0 %v347
    %1481 = vmatprep.subr.bf16.mxu0 %v352
    %1482 = vmatpush1.bf16.msra.mxu0 %v351
    %1483 = vmatprep.subr.bf16.mxu0 %v356
    %1484 = vmatpush1.bf16.msra.mxu0 %v355
    %1485 = vmatprep.subr.bf16.mxu0 %v360
    %1486 = vmatpush1.bf16.msra.mxu0 %v359
    %1487 = vmatprep.subr.bf16.mxu0 %v364
    %1488 = vmatpush1.bf16.msra.mxu0 %v363
    %1489 = vmatprep.subr.bf16.mxu0 %v368
    %1490 = vmatpush1.bf16.msra.mxu0 %v367
    %1491 = vmatprep.subr.bf16.mxu0 %v372
    %1492 = vmatpush1.bf16.msra.mxu0 %v371
    %1493 = vmatprep.subr.bf16.mxu0 %v376
    %1494 = vmatpush1.bf16.msra.mxu0 %v375
    %1495 = vmatprep.subr.bf16.mxu0 0
    %1496 = vmatpush1.bf16.msra.mxu0 0
    %1497 = vmatprep.subr.bf16.mxu0 0
    %1498 = vmatpush1.bf16.msra.mxu0 0
    %1499 = vmatprep.subr.bf16.mxu0 0
    %1500 = vmatpush1.bf16.msra.mxu0 0
    %1501 = vmatprep.subr.bf16.mxu0 0
    %1502 = vmatpush1.bf16.msra.mxu0 0
    %1503 = vmatprep.subr.bf16.mxu0 0
    %1504 = vmatpush1.bf16.msra.mxu0 0
    %1505 = vmatprep.subr.bf16.mxu0 0
    %1506 = vmatpush1.bf16.msra.mxu0 0
    %1507 = vmatprep.subr.bf16.mxu0 0
    %1508 = vmatpush1.bf16.msra.mxu0 0
    %1509 = vmatprep.subr.bf16.mxu0 0
    %1510 = vmatpush1.bf16.msra.mxu0 0
    %1511 = vmatprep.mubr.bf16.mxu0 0
    %1512 = vmatmul.mubr.bf16.gmra.mrb[0].mxu0 %v1437
    %v1513 = vpop.f32.mrb[0].mxu0
    %v1514 = vadd.f32 0.0, %v1513
    %v1515 = vpop.f32.mrb[0].mxu0
    %v1516 = vadd.f32 0.0, %v1515
    %v1517 = vpop.f32.mrb[0].mxu0
    %v1518 = vpop.f32.mrb[0].mxu0
    %1519 = vdwg.mxu0
    %v1524 = vcombine.low %v1473, %v1475
    %v1525 = vcombine.low %v1514, %v1516
    %v1527 = vunpack.c.l.s4 1966171168
    %v1528 = vunpack.c.0.s8 %v1527
    %v1529 = vlaneseq
    %v1530 = vshrl.u32 %v1529, 7
    %v1531 = vsub.s32 %v1528, %v1530
    %v1532 = vrot.slane %v1524, %v1531
    %v1534 = vunpack.c.l.s4 1966171168
    %v1535 = vunpack.c.0.s8 %v1534
    %v1536 = vlaneseq
    %v1537 = vshrl.u32 %v1536, 7
    %v1538 = vsub.s32 %v1535, %v1537
    %v1539 = vrot.slane %v1525, %v1538
    %v1540 = vcombine.low %v1532, %v1539
    %v1542 = vunpack.c.l.s4 1966171168
    %v1543 = vunpack.c.0.s8 %v1542
    %v1544 = vlaneseq
    %v1545 = vshrl.u32 %v1544, 7
    %v1546 = vsub.s32 %v1543, %v1545
    %v1547 = vrot.slane %v1540, %v1546
    %v1549 = vadd.f32 %v1436, %v1547
    %v1550 = vxor.u32 %v1549, 2147483648
    %v1551 = vmul.f32 %v1550, 1.442695
    %v1552 = vpow.pop %v1551
    %v1553 = vadd.f32 %v1552, 1.0
    %v1554 = vrcp.pop %v1553
    %v1555 = vmul.f32 1.0, %v1554
    %v1557 = vrot.slane %v1549, 1
    %v1559 = vxor.u32 %v1557, 2147483648
    %v1560 = vmul.f32 %v1559, 1.442695
    %v1561 = vpow.pop %v1560
    %v1562 = vadd.f32 %v1561, 1.0
    %v1563 = vrcp.pop %v1562
    %v1564 = vmul.f32 1.0, %v1563
    %v1565 = vrot.slane %v1549, 2
    %v1567 = vtanh.pop %v1565
    %v1568 = vrot.slane %v1549, 3
    %v1570 = vxor.u32 %v1568, 2147483648
    %v1571 = vmul.f32 %v1570, 1.442695
    %v1572 = vpow.pop %v1571
    %v1573 = vadd.f32 %v1572, 1.0
    %v1574 = vrcp.pop %v1573
    %v1575 = vmul.f32 1.0, %v1574
    %v1576 = vmul.f32 %v1564, %v1431
    %v1577 = vmul.f32 %v1555, %v1567
    %v1578 = vadd.f32 %v1576, %v1577
    %v1579 = vtanh.pop %v1578
    %v1580 = vmul.f32 %v1575, %v1579
    %1581 = vst [vmem:[#allocation3 + $0x7] sm:$0x1] %v1580
    %v1582 = vld [vmem:[#allocation3] sm:$0xff]
    %v1583 = vpack.c.bf16 %v1582, %v1582
    %v1584 = vld [vmem:[#allocation10] sm:$0xf]
    %v1585 = vld [vmem:[#allocation10 + $0x4] sm:$0xf]
    %v1586 = vld [vmem:[#allocation10 + $0x8] sm:$0xf]
    %v1587 = vld [vmem:[#allocation10 + $0xc] sm:$0xf]
    %v1588 = vld [vmem:[#allocation10 + $0x10] sm:$0xf]
    %v1589 = vld [vmem:[#allocation10 + $0x14] sm:$0xf]
    %v1590 = vld [vmem:[#allocation10 + $0x18] sm:$0xf]
    %v1591 = vld [vmem:[#allocation10 + $0x1c] sm:$0xf]
    %v1592 = vld [vmem:[#allocation10 + $0x20] sm:$0xf]
    %v1593 = vld [vmem:[#allocation10 + $0x24] sm:$0xf]
    %v1594 = vld [vmem:[#allocation10 + $0x28] sm:$0xf]
    %v1595 = vld [vmem:[#allocation10 + $0x2c] sm:$0xf]
    %v1596 = vld [vmem:[#allocation10 + $0x30] sm:$0xf]
    %v1597 = vld [vmem:[#allocation10 + $0x34] sm:$0xf]
    %v1598 = vld [vmem:[#allocation10 + $0x38] sm:$0xf]
    %v1599 = vld [vmem:[#allocation10 + $0x3c] sm:$0xf]
    %v1600 = vld [vmem:[%s5] sm:$0x1]
    %v1602 = vlaneseq
    %v1603 = vshrl.u32 %v1602, 7
    %v1604 = vsub.s32 0, %v1603
    %v1605 = vrot.slane %v1600, %v1604
    %v1623 = vunpack.c.l.b16 %v1584
    %v1624 = vunpack.c.l.b16 %v1585
    %v1625 = vunpack.c.l.b16 %v1586
    %v1626 = vunpack.c.l.b16 %v1587
    %v1627 = vunpack.c.l.b16 %v1588
    %v1628 = vunpack.c.l.b16 %v1589
    %v1629 = vunpack.c.l.b16 %v1590
    %v1630 = vunpack.c.l.b16 %v1591
    %v1631 = vunpack.c.l.b16 %v1592
    %v1632 = vunpack.c.l.b16 %v1593
    %v1633 = vunpack.c.l.b16 %v1594
    %v1634 = vunpack.c.l.b16 %v1595
    %v1635 = vunpack.c.l.b16 %v1596
    %v1636 = vunpack.c.l.b16 %v1597
    %v1637 = vunpack.c.l.b16 %v1598
    %v1638 = vunpack.c.l.b16 %v1599
    %v1639 = vpack.c.b16 %v1624, %v1623
    %v1640 = vpack.c.b16 %v1626, %v1625
    %v1641 = vpack.c.b16 %v1628, %v1627
    %v1642 = vpack.c.b16 %v1630, %v1629
    %v1643 = vpack.c.b16 %v1632, %v1631
    %v1644 = vpack.c.b16 %v1634, %v1633
    %v1645 = vpack.c.b16 %v1636, %v1635
    %v1646 = vpack.c.b16 %v1638, %v1637
    %1655 = vmatprep.subr.bf16.mxu0 0
    %1656 = vmatpush1.bf16.msra.mxu0 %v1639
    %1657 = vmatprep.subr.bf16.mxu0 0
    %1658 = vmatpush1.bf16.msra.mxu0 %v1640
    %1659 = vmatprep.subr.bf16.mxu0 0
    %1660 = vmatpush1.bf16.msra.mxu0 %v1641
    %1661 = vmatprep.subr.bf16.mxu0 0
    %1662 = vmatpush1.bf16.msra.mxu0 %v1642
    %1663 = vmatprep.subr.bf16.mxu0 0
    %1664 = vmatpush1.bf16.msra.mxu0 %v1643
    %1665 = vmatprep.subr.bf16.mxu0 0
    %1666 = vmatpush1.bf16.msra.mxu0 %v1644
    %1667 = vmatprep.subr.bf16.mxu0 0
    %1668 = vmatpush1.bf16.msra.mxu0 %v1645
    %1669 = vmatprep.subr.bf16.mxu0 0
    %1670 = vmatpush1.bf16.msra.mxu0 %v1646
    %1671 = vmatprep.subr.bf16.mxu0 0
    %1672 = vmatpush1.bf16.msra.mxu0 0
    %1673 = vmatprep.subr.bf16.mxu0 0
    %1674 = vmatpush1.bf16.msra.mxu0 0
    %1675 = vmatprep.subr.bf16.mxu0 0
    %1676 = vmatpush1.bf16.msra.mxu0 0
    %1677 = vmatprep.subr.bf16.mxu0 0
    %1678 = vmatpush1.bf16.msra.mxu0 0
    %1679 = vmatprep.subr.bf16.mxu0 0
    %1680 = vmatpush1.bf16.msra.mxu0 0
    %1681 = vmatprep.subr.bf16.mxu0 0
    %1682 = vmatpush1.bf16.msra.mxu0 0
    %1683 = vmatprep.subr.bf16.mxu0 0
    %1684 = vmatpush1.bf16.msra.mxu0 0
    %1685 = vmatprep.subr.bf16.mxu0 0
    %1686 = vmatpush1.bf16.msra.mxu0 0
    %1687 = vmatprep.mubr.bf16.mxu0 0
    %1688 = vmatmul.mubr.bf16.gmra.mrb[0].mxu0 %v1583
    %v1689 = vpop.f32.mrb[0].mxu0
    %v1690 = vadd.f32 %v1605, %v1689
    %v1691 = vpop.f32.mrb[0].mxu0
    %v1692 = vpop.f32.mrb[0].mxu0
    %v1693 = vpop.f32.mrb[0].mxu0
    %1694 = vdwg.mxu0
    %1695 = vmax.xlane.f32.xlu0 %v1690
    %v1696 = vpop.xlane.xlu0 %1695
    %v1697 = vsub.f32 %v1690, %v1696
    %v1698 = vmul.f32 %v1697, 1.442695
    %v1699 = vpow.pop %v1698
    %1700 = vadd.xlane.f32.xlu0 %v1699
    %v1701 = vpop.xlane.xlu0 %1700
    %v1702 = vlog2.pop %v1701
    %v1703 = vmul.f32 %v1702, 0.6931472
    %v1704 = vadd.f32 %v1696, %v1703
    %v1705 = vsub.f32 %v1690, %v1704
    %1706 = vst [vmem:[#allocation12] sm:$0xff] %v1705
    // Predicated region
    $region42: #{tpu_custom_call.1} parent=1 // pred_check
      _
    $region43: #{tpu_custom_call.1} parent=1 // pred_check_branch
      %1708 = sbr.rel (0) target = $region45
    $region44: #{tpu_custom_call.1} parent=1 // pred_region
      %s1710 = ssub.s32 128, 128
      %1711 = vsyncadd [#allocation6], %s1710
      %s1713 = sshll.u32 [#allocation12], 4
      %s1714 = int_to_ptr.vmem [resolvable:$true] %s1713
      %1716 = dma.vmem_to_hbm [thread:$0]  %s1714, 128, %s6, [#allocation6]
    $region45: #{tpu_custom_call.1} parent=1 // pred_fallthru
      _
    // Predicated region
    $region46: #{tpu_custom_call.1} parent=1 // pred_check
      _
    $region47: #{tpu_custom_call.1} parent=1 // pred_check_branch
      %1718 = sbr.rel (0) target = $region49
    $region48: #{tpu_custom_call.1} parent=1 // pred_region
      %1719 = dma.done [#allocation6], 128
    $region49: #{tpu_custom_call.1} parent=1 // pred_fallthru
      _
    %1720 = vsyncpa [#allocation5], 1
    %1721 = vsyncpa [#allocation8], 1
    %1722 = vsyncpa [#allocation11], 1
    %1723 = vsyncpa [#allocation6], 1

</llo_original>
